<compile_context>
chip_gen: v6e
topology: v6e:2x2x1
jax: 0.10.0
libtpu: 0.0.40
codegen_flags: <defaults>
</compile_context>

<pallas_src>
import numpy as np
import jax
import jax.numpy as jnp
from jax import lax
from jax.experimental import pallas as pl
from jax.experimental.pallas import tpu as pltpu


# ----------------------------- fused Pallas kernel -----------------------------

def _loc_net_kernel(x_ref, w1_ref, b1_ref, w2_ref, b2_ref,
                    wf1_ref, bf1_ref, wf2_ref, bf2_ref, o_ref):
    """One image per grid step; every intermediate stays in VMEM/vregs."""
    xr = x_ref[...][0]                                  # (7, 128): 4 image rows per slab row

    # ---- conv1 + 2x2 maxpool + ReLU as ONE matmul ----
    # Row t of xc1 holds image rows 4t..4t+7 (inputs for pooled rows 2t, 2t+1).
    # Columns of w1_ref enumerate (pool corner ph,pw | row parity p | col j | chan co),
    # with the 4 pool corners in separate 256-lane quarters.
    xc1 = jnp.concatenate([xr[0:6, :], xr[1:7, :]], axis=-1)                # (6, 256)
    z1 = jnp.dot(xc1, w1_ref[...], preferred_element_type=jnp.float32)
    z1 = z1 + b1_ref[...]                                                   # (6, 1024)
    h1 = jnp.maximum(jnp.maximum(z1[:, 0:256], z1[:, 256:512]),
                     jnp.maximum(z1[:, 512:768], z1[:, 768:1024]))
    h1 = jnp.maximum(h1, 0.0)                                               # (6, 256)

    # ---- conv2 (dropout2d = identity in eval) + 2x2 maxpool + ReLU, same trick ----
    xc2 = jnp.concatenate([h1[0:4, :], h1[1:5, :], h1[2:6, :]], axis=-1)    # (4, 768)
    z2 = jnp.dot(xc2, w2_ref[...], preferred_element_type=jnp.float32)
    z2 = z2 + b2_ref[...]                                                   # (4, 512)
    h2 = jnp.maximum(jnp.maximum(z2[:, 0:128], z2[:, 128:256]),
                     jnp.maximum(z2[:, 256:384], z2[:, 384:512]))
    h2 = jnp.maximum(h2, 0.0)                                               # (4, 128)

    # ---- flatten (NHWC; fc1 weight pre-permuted) -> fc1 + ReLU -> (dropout=id) -> fc2 ----
    feat = jnp.concatenate([h2[0:1, :], h2[1:2, :], h2[2:3, :], h2[3:4, :]],
                           axis=-1)                                         # (1, 512)
    hid = jnp.dot(feat, wf1_ref[...], preferred_element_type=jnp.float32) + bf1_ref[...]
    hid = jnp.maximum(hid, 0.0)                                             # (1, 50)
    pts = jnp.dot(hid, wf2_ref[...], preferred_element_type=jnp.float32) + bf2_ref[...]
    o_ref[...] = pts[None]                                                  # (1, 1, n_out)


# ------------------------------ weight expansion -------------------------------

def _prepare_weights(params):
    """Expand standard conv/fc weights into the lane-aligned matmul operands used
    by the fused kernel (pure JAX; tiny, runs under jit)."""
    w1 = params["w_conv1"][:, :, 0, :]          # (5, 5, 10)   HWIO, cin=1 squeezed
    b1 = params["b_conv1"]                      # (10,)
    w2 = params["w_conv2"]                      # (5, 5, 10, 20) HWIO
    b2 = params["b_conv2"]                      # (20,)
    wf1 = params["w_fc1"]                       # (320, 50), rows in NCHW (c,h,w) order
    bf1 = params["b_fc1"]                       # (50,)
    wf2 = params["w_fc2"]                       # (50, n_out)
    bf2 = params["b_fc2"]                       # (n_out,)

    # ---- conv1 stage matrix (256, 1024) ----
    # input lane : d*128 + r*28 + iw   (image row 4t + 4d + r, image col iw)
    # output lane: ph*512 + pw*256 + p*128 + j*10 + co
    #              = conv1 output pixel (4t + 2p + ph, 2j + pw), channel co
    p, ph, pw, kh, kw, j, co = np.meshgrid(
        np.arange(2), np.arange(2), np.arange(2), np.arange(5), np.arange(5),
        np.arange(12), np.arange(10), indexing="ij")
    off = 2 * p + ph + kh                                       # image-row offset 0..7
    rows1 = (off // 4) * 128 + (off % 4) * 28 + (2 * j + pw + kw)
    cols1 = ph * 512 + pw * 256 + p * 128 + j * 10 + co
    w1_big = jnp.zeros((256, 1024), jnp.float32).at[rows1.ravel(), cols1.ravel()].set(
        w1[kh.ravel(), kw.ravel(), co.ravel()])
    pb, phb, pwb, jb, cob = np.meshgrid(
        np.arange(2), np.arange(2), np.arange(2), np.arange(12), np.arange(10),
        indexing="ij")
    b1_big = jnp.zeros((1, 1024), jnp.float32).at[
        0, (phb * 512 + pwb * 256 + pb * 128 + jb * 10 + cob).ravel()].set(b1[cob.ravel()])

    # ---- conv2 stage matrix (768, 512) ----
    # input lane : s*128 + j*10 + ci   (pooled conv1 pixel (2*i2 + s, j), chan ci)
    # output lane: ph*256 + pw*128 + j2*20 + c2
    #              = conv2 output pixel (2*i2 + ph, 2*j2 + pw), channel c2
    ph2, pw2, kh2, kw2, j2, ci, c2 = np.meshgrid(
        np.arange(2), np.arange(2), np.arange(5), np.arange(5), np.arange(4),
        np.arange(10), np.arange(20), indexing="ij")
    rows2 = (ph2 + kh2) * 128 + (2 * j2 + pw2 + kw2) * 10 + ci
    cols2 = ph2 * 256 + pw2 * 128 + j2 * 20 + c2
    w2_big = jnp.zeros((768, 512), jnp.float32).at[rows2.ravel(), cols2.ravel()].set(
        w2[kh2.ravel(), kw2.ravel(), ci.ravel(), c2.ravel()])
    ph2b, pw2b, j2b, c2b = np.meshgrid(
        np.arange(2), np.arange(2), np.arange(4), np.arange(20), indexing="ij")
    b2_big = jnp.zeros((1, 512), jnp.float32).at[
        0, (ph2b * 256 + pw2b * 128 + j2b * 20 + c2b).ravel()].set(b2[c2b.ravel()])

    # ---- fc1 weight: NCHW-ordered rows -> rows of the lane-padded NHWC slab (512, 50) ----
    n_hidden = wf1.shape[1]
    wf1_nhwc = wf1.reshape(20, 4, 4, n_hidden).transpose(1, 2, 0, 3).reshape(320, n_hidden)
    hh, wwv, ccv = np.meshgrid(np.arange(4), np.arange(4), np.arange(20), indexing="ij")
    wf1_big = jnp.zeros((512, n_hidden), jnp.float32).at[
        (hh * 128 + wwv * 20 + ccv).ravel(), :].set(wf1_nhwc)

    return dict(w1=w1_big, b1=b1_big, w2=w2_big, b2=b2_big,
                wf1=wf1_big, bf1=bf1[None, :], wf2=wf2, bf2=bf2[None, :])


# ------------------------------- forward wrapper --------------------------------

def _resident_spec(arr):
    zeros = (0,) * arr.ndim
    return pl.BlockSpec(arr.shape, lambda b, _z=zeros: _z)


def unbounded_grid_loc_net_forward(params, x_nchw):
    """x_nchw: (B, 1, 28, 28) float32 -> (B, grid_size**2, 2)."""
    B = x_nchw.shape[0]
    w = _prepare_weights(params)
    n_out = w["wf2"].shape[1]

    # (B,1,28,28) -> (B,7,112) (4 image rows per slab row) -> zero-pad lanes to 128.
    xr = jnp.pad(x_nchw.reshape(B, 7, 112), ((0, 0), (0, 0), (0, 16)))

    operands = (xr, w["w1"], w["b1"], w["w2"], w["b2"],
                w["wf1"], w["bf1"], w["wf2"], w["bf2"])
    in_specs = [pl.BlockSpec((1, 7, 128), lambda b: (b, 0, 0))]
    in_specs += [_resident_spec(a) for a in operands[1:]]

    out = pl.pallas_call(
        _loc_net_kernel,
        out_shape=jax.ShapeDtypeStruct((B, 1, n_out), jnp.float32),
        grid=(B,),
        in_specs=in_specs,
        out_specs=pl.BlockSpec((1, 1, n_out), lambda b: (b, 0, 0)),
        compiler_params=pltpu.CompilerParams(dimension_semantics=("parallel",)),
    )(*operands)
    return out.reshape(B, -1, 2)


# ------------------------ pure-JAX reference (for checking) ---------------------

def _reference_forward(params, x_nchw):
    x = jnp.transpose(x_nchw, (0, 2, 3, 1))                      # NHWC
    y = lax.conv_general_dilated(x, params["w_conv1"], (1, 1), "VALID",
                                 dimension_numbers=("NHWC", "HWIO", "NHWC"))
    y = y + params["b_conv1"]
    y = lax.reduce_window(y, -jnp.inf, lax.max, (1, 2, 2, 1), (1, 2, 2, 1), "VALID")
    y = jnp.maximum(y, 0.0)
    y = lax.conv_general_dilated(y, params["w_conv2"], (1, 1), "VALID",
                                 dimension_numbers=("NHWC", "HWIO", "NHWC"))
    y = y + params["b_conv2"]
    y = lax.reduce_window(y, -jnp.inf, lax.max, (1, 2, 2, 1), (1, 2, 2, 1), "VALID")
    y = jnp.maximum(y, 0.0)
    feat = jnp.transpose(y, (0, 3, 1, 2)).reshape(x.shape[0], 320)   # NCHW flatten
    h = jnp.maximum(feat @ params["w_fc1"] + params["b_fc1"], 0.0)
    return h @ params["w_fc2"] + params["b_fc2"]


# ------------------------------- params / helpers -------------------------------

def get_control_points(grid_size):
    vals = jnp.linspace(-1.0, 1.0, grid_size)
    return jnp.stack([jnp.repeat(vals, grid_size), jnp.tile(vals, grid_size)], axis=1)


def init_params(key, grid_size):
    num_output = grid_size ** 2 * 2
    ks = jax.random.split(key, 6)
    return {
        # conv weights in HWIO; fc1 rows in PyTorch's NCHW flatten order
        "w_conv1": 0.1 * jax.random.normal(ks[0], (5, 5, 1, 10), jnp.float32),
        "b_conv1": 0.1 * jax.random.normal(ks[1], (10,), jnp.float32),
        "w_conv2": 0.1 * jax.random.normal(ks[2], (5, 5, 10, 20), jnp.float32),
        "b_conv2": 0.1 * jax.random.normal(ks[3], (20,), jnp.float32),
        "w_fc1": 0.05 * jax.random.normal(ks[4], (320, 50), jnp.float32),
        "b_fc1": 0.1 * jax.random.normal(ks[5], (50,), jnp.float32),
        # UnBoundedGridLocNet.__init__: fc2 weight zeroed, bias = control points
        "w_fc2": jnp.zeros((50, num_output), jnp.float32),
        "b_fc2": get_control_points(grid_size).reshape(-1).astype(jnp.float32),
    }


# ----------------------------------- demo run -----------------------------------

if __name__ == "__main__":
    grid_size = 4
    num_output = grid_size ** 2 * 2
    key = jax.random.PRNGKey(0)
    k_param, k_in, k_w2, k_b2 = jax.random.split(key, 4)

    params = init_params(k_param, grid_size)
    # MNIST-shaped input: 28x28 is required by the module (fc1 expects 320 = 20*4*4)
    x = jax.random.normal(k_in, (2, 1, 28, 28), jnp.float32)

    fwd = jax.jit(unbounded_grid_loc_net_forward)
    ref = jax.jit(_reference_forward)

    # (a) exercise the full conv/pool/fc path with a non-degenerate fc2 and compare
    #     against a pure-JAX/XLA reference of the same CNN.
    tparams = dict(params)
    tparams["w_fc2"] = 0.1 * jax.random.normal(k_w2, (50, num_output), jnp.float32)
    tparams["b_fc2"] = 0.05 * jax.random.normal(k_b2, (num_output,), jnp.float32)
    got = jax.block_until_ready(fwd(tparams, x)).reshape(2, num_output)
    want = jax.block_until_ready(ref(tparams, x))
    assert got.shape == want.shape, (got.shape, want.shape)
    assert jnp.allclose(got, want, atol=5e-2, rtol=5e-2), float(jnp.abs(got - want).max())

    # (b) module-init semantics: fc2 weight is zero and its bias is the control-point
    #     grid, so every batch row must equal the control points.
    out = jax.block_until_ready(fwd(params, x))
    assert out.shape == (2, grid_size ** 2, 2), out.shape
    cps = get_control_points(grid_size)
    assert jnp.allclose(out[0], cps, atol=1e-5) and jnp.allclose(out[1], cps, atol=1e-5)

    print("KERNEL_OK")
</pallas_src>

<mosaic_0001>
module attributes {stable_mosaic.version = 11 : i64} {
  func.func @_loc_net_kernel(%arg0: i32, %arg1: memref<1x7x128xf32, #tpu.memory_space<vmem>>, %arg2: memref<256x1024xf32, #tpu.memory_space<vmem>>, %arg3: memref<1x1024xf32, #tpu.memory_space<vmem>>, %arg4: memref<768x512xf32, #tpu.memory_space<vmem>>, %arg5: memref<1x512xf32, #tpu.memory_space<vmem>>, %arg6: memref<512x50xf32, #tpu.memory_space<vmem>>, %arg7: memref<1x50xf32, #tpu.memory_space<vmem>>, %arg8: memref<50x32xf32, #tpu.memory_space<vmem>>, %arg9: memref<1x32xf32, #tpu.memory_space<vmem>>, %arg10: memref<1x1x32xf32, #tpu.memory_space<vmem>>) attributes {dimension_semantics = [#tpu.dimension_semantics<parallel>], iteration_bounds = array<i64: 2>, scalar_prefetch = 0 : i64, scratch_operands = 0 : i64, tpu.core_type = #tpu.core_type<tc>, window_params = [{transform_indices = @transform_0, window_bounds = array<i64: 1, 7, 128>}, {pipeline_mode = #tpu.pipeline_mode<synchronous>, transform_indices = @transform_1, window_bounds = array<i64: 256, 1024>}, {pipeline_mode = #tpu.pipeline_mode<synchronous>, transform_indices = @transform_2, window_bounds = array<i64: 1, 1024>}, {pipeline_mode = #tpu.pipeline_mode<synchronous>, transform_indices = @transform_3, window_bounds = array<i64: 768, 512>}, {pipeline_mode = #tpu.pipeline_mode<synchronous>, transform_indices = @transform_4, window_bounds = array<i64: 1, 512>}, {pipeline_mode = #tpu.pipeline_mode<synchronous>, transform_indices = @transform_5, window_bounds = array<i64: 512, 50>}, {pipeline_mode = #tpu.pipeline_mode<synchronous>, transform_indices = @transform_6, window_bounds = array<i64: 1, 50>}, {pipeline_mode = #tpu.pipeline_mode<synchronous>, transform_indices = @transform_7, window_bounds = array<i64: 50, 32>}, {pipeline_mode = #tpu.pipeline_mode<synchronous>, transform_indices = @transform_8, window_bounds = array<i64: 1, 32>}, {transform_indices = @transform_9, window_bounds = array<i64: 1, 1, 32>}]} {
    %c0 = arith.constant 0 : index
    %c0_0 = arith.constant 0 : index
    %c0_1 = arith.constant 0 : index
    %0 = vector.load %arg1[%c0, %c0_0, %c0_1] : memref<1x7x128xf32, #tpu.memory_space<vmem>>, vector<1x7x128xf32>
    %1 = vector.shape_cast %0 : vector<1x7x128xf32> to vector<7x128xf32>
    %2 = vector.extract_strided_slice %1 {offsets = [0, 0], sizes = [6, 128], strides = [1, 1]} : vector<7x128xf32> to vector<6x128xf32>
    %3 = vector.extract_strided_slice %1 {offsets = [1, 0], sizes = [6, 128], strides = [1, 1]} : vector<7x128xf32> to vector<6x128xf32>
    %4 = tpu.concatenate %2, %3 in 1 : vector<6x128xf32>, vector<6x128xf32> -> vector<6x256xf32>
    %c0_2 = arith.constant 0 : index
    %c0_3 = arith.constant 0 : index
    %5 = vector.load %arg2[%c0_2, %c0_3] : memref<256x1024xf32, #tpu.memory_space<vmem>>, vector<256x1024xf32>
    %cst = arith.constant dense<0.000000e+00> : vector<6x1024xf32>
    %6 = tpu.matmul %4, %5, %cst {dimension_numbers = #tpu.dot_dimension_numbers<[1], [0], [0], [1], [0, 0, 1, 1], [], []>} : vector<6x256xf32>, vector<256x1024xf32>, vector<6x1024xf32> -> vector<6x1024xf32>
    %c0_4 = arith.constant 0 : index
    %c0_5 = arith.constant 0 : index
    %7 = vector.load %arg3[%c0_4, %c0_5] : memref<1x1024xf32, #tpu.memory_space<vmem>>, vector<1x1024xf32>
    %8 = vector.broadcast %7 : vector<1x1024xf32> to vector<6x1024xf32>
    %9 = arith.addf %6, %8 : vector<6x1024xf32>
    %10 = vector.extract_strided_slice %9 {offsets = [0, 0], sizes = [6, 256], strides = [1, 1]} : vector<6x1024xf32> to vector<6x256xf32>
    %11 = vector.extract_strided_slice %9 {offsets = [0, 256], sizes = [6, 256], strides = [1, 1]} : vector<6x1024xf32> to vector<6x256xf32>
    %12 = arith.maximumf %10, %11 : vector<6x256xf32>
    %13 = vector.extract_strided_slice %9 {offsets = [0, 512], sizes = [6, 256], strides = [1, 1]} : vector<6x1024xf32> to vector<6x256xf32>
    %14 = vector.extract_strided_slice %9 {offsets = [0, 768], sizes = [6, 256], strides = [1, 1]} : vector<6x1024xf32> to vector<6x256xf32>
    %15 = arith.maximumf %13, %14 : vector<6x256xf32>
    %16 = arith.maximumf %12, %15 : vector<6x256xf32>
    %cst_6 = arith.constant 0.000000e+00 : f32
    %17 = vector.broadcast %cst_6 : f32 to vector<6x256xf32>
    %18 = arith.maximumf %16, %17 : vector<6x256xf32>
    %19 = vector.extract_strided_slice %18 {offsets = [0, 0], sizes = [4, 256], strides = [1, 1]} : vector<6x256xf32> to vector<4x256xf32>
    %20 = vector.extract_strided_slice %18 {offsets = [1, 0], sizes = [4, 256], strides = [1, 1]} : vector<6x256xf32> to vector<4x256xf32>
    %21 = vector.extract_strided_slice %18 {offsets = [2, 0], sizes = [4, 256], strides = [1, 1]} : vector<6x256xf32> to vector<4x256xf32>
    %22 = tpu.concatenate %19, %20, %21 in 1 : vector<4x256xf32>, vector<4x256xf32>, vector<4x256xf32> -> vector<4x768xf32>
    %c0_7 = arith.constant 0 : index
    %c0_8 = arith.constant 0 : index
    %23 = vector.load %arg4[%c0_7, %c0_8] : memref<768x512xf32, #tpu.memory_space<vmem>>, vector<768x512xf32>
    %cst_9 = arith.constant dense<0.000000e+00> : vector<4x512xf32>
    %24 = tpu.matmul %22, %23, %cst_9 {dimension_numbers = #tpu.dot_dimension_numbers<[1], [0], [0], [1], [0, 0, 1, 1], [], []>} : vector<4x768xf32>, vector<768x512xf32>, vector<4x512xf32> -> vector<4x512xf32>
    %c0_10 = arith.constant 0 : index
    %c0_11 = arith.constant 0 : index
    %25 = vector.load %arg5[%c0_10, %c0_11] : memref<1x512xf32, #tpu.memory_space<vmem>>, vector<1x512xf32>
    %26 = vector.broadcast %25 : vector<1x512xf32> to vector<4x512xf32>
    %27 = arith.addf %24, %26 : vector<4x512xf32>
    %28 = vector.extract_strided_slice %27 {offsets = [0, 0], sizes = [4, 128], strides = [1, 1]} : vector<4x512xf32> to vector<4x128xf32>
    %29 = vector.extract_strided_slice %27 {offsets = [0, 128], sizes = [4, 128], strides = [1, 1]} : vector<4x512xf32> to vector<4x128xf32>
    %30 = arith.maximumf %28, %29 : vector<4x128xf32>
    %31 = vector.extract_strided_slice %27 {offsets = [0, 256], sizes = [4, 128], strides = [1, 1]} : vector<4x512xf32> to vector<4x128xf32>
    %32 = vector.extract_strided_slice %27 {offsets = [0, 384], sizes = [4, 128], strides = [1, 1]} : vector<4x512xf32> to vector<4x128xf32>
    %33 = arith.maximumf %31, %32 : vector<4x128xf32>
    %34 = arith.maximumf %30, %33 : vector<4x128xf32>
    %cst_12 = arith.constant 0.000000e+00 : f32
    %35 = vector.broadcast %cst_12 : f32 to vector<4x128xf32>
    %36 = arith.maximumf %34, %35 : vector<4x128xf32>
    %37 = vector.extract_strided_slice %36 {offsets = [0, 0], sizes = [1, 128], strides = [1, 1]} : vector<4x128xf32> to vector<1x128xf32>
    %38 = vector.extract_strided_slice %36 {offsets = [1, 0], sizes = [1, 128], strides = [1, 1]} : vector<4x128xf32> to vector<1x128xf32>
    %39 = vector.extract_strided_slice %36 {offsets = [2, 0], sizes = [1, 128], strides = [1, 1]} : vector<4x128xf32> to vector<1x128xf32>
    %40 = vector.extract_strided_slice %36 {offsets = [3, 0], sizes = [1, 128], strides = [1, 1]} : vector<4x128xf32> to vector<1x128xf32>
    %41 = tpu.concatenate %37, %38, %39, %40 in 1 : vector<1x128xf32>, vector<1x128xf32>, vector<1x128xf32>, vector<1x128xf32> -> vector<1x512xf32>
    %c0_13 = arith.constant 0 : index
    %c0_14 = arith.constant 0 : index
    %42 = vector.load %arg6[%c0_13, %c0_14] : memref<512x50xf32, #tpu.memory_space<vmem>>, vector<512x50xf32>
    %cst_15 = arith.constant dense<0.000000e+00> : vector<1x50xf32>
    %43 = tpu.matmul %41, %42, %cst_15 {dimension_numbers = #tpu.dot_dimension_numbers<[1], [0], [0], [1], [0, 0, 1, 1], [], []>} : vector<1x512xf32>, vector<512x50xf32>, vector<1x50xf32> -> vector<1x50xf32>
    %c0_16 = arith.constant 0 : index
    %c0_17 = arith.constant 0 : index
    %44 = vector.load %arg7[%c0_16, %c0_17] : memref<1x50xf32, #tpu.memory_space<vmem>>, vector<1x50xf32>
    %45 = arith.addf %43, %44 : vector<1x50xf32>
    %cst_18 = arith.constant 0.000000e+00 : f32
    %46 = vector.broadcast %cst_18 : f32 to vector<1x50xf32>
    %47 = arith.maximumf %45, %46 : vector<1x50xf32>
    %c0_19 = arith.constant 0 : index
    %c0_20 = arith.constant 0 : index
    %48 = vector.load %arg8[%c0_19, %c0_20] : memref<50x32xf32, #tpu.memory_space<vmem>>, vector<50x32xf32>
    %cst_21 = arith.constant dense<0.000000e+00> : vector<1x32xf32>
    %49 = tpu.matmul %47, %48, %cst_21 {dimension_numbers = #tpu.dot_dimension_numbers<[1], [0], [0], [1], [0, 0, 1, 1], [], []>} : vector<1x50xf32>, vector<50x32xf32>, vector<1x32xf32> -> vector<1x32xf32>
    %c0_22 = arith.constant 0 : index
    %c0_23 = arith.constant 0 : index
    %50 = vector.load %arg9[%c0_22, %c0_23] : memref<1x32xf32, #tpu.memory_space<vmem>>, vector<1x32xf32>
    %51 = arith.addf %49, %50 : vector<1x32xf32>
    %52 = vector.shape_cast %51 : vector<1x32xf32> to vector<1x1x32xf32>
    %c0_24 = arith.constant 0 : index
    %c0_25 = arith.constant 0 : index
    %c0_26 = arith.constant 0 : index
    %53 = vector.load %arg10[%c0_24, %c0_25, %c0_26] : memref<1x1x32xf32, #tpu.memory_space<vmem>>, vector<1x1x32xf32>
    tpu.vector_store %arg10[%c0_24, %c0_25, %c0_26], %52 {strides = array<i32>} : memref<1x1x32xf32, #tpu.memory_space<vmem>>, vector<1x1x32xf32>,
    return
  }
  func.func @transform_0(%arg0: i32) -> (i32, i32, i32) {
    %c0_i32 = arith.constant 0 : i32
    %c0_i32_0 = arith.constant 0 : i32
    %c0_i32_1 = arith.constant 0 : i32
    return %arg0, %c0_i32, %c0_i32_0 : i32, i32, i32
  }
  func.func @transform_1(%arg0: i32) -> (i32, i32) {
    %c0_i32 = arith.constant 0 : i32
    %c0_i32_0 = arith.constant 0 : i32
    %c0_i32_1 = arith.constant 0 : i32
    return %c0_i32, %c0_i32_0 : i32, i32
  }
  func.func @transform_2(%arg0: i32) -> (i32, i32) {
    %c0_i32 = arith.constant 0 : i32
    %c0_i32_0 = arith.constant 0 : i32
    %c0_i32_1 = arith.constant 0 : i32
    return %c0_i32, %c0_i32_0 : i32, i32
  }
  func.func @transform_3(%arg0: i32) -> (i32, i32) {
    %c0_i32 = arith.constant 0 : i32
    %c0_i32_0 = arith.constant 0 : i32
    %c0_i32_1 = arith.constant 0 : i32
    return %c0_i32, %c0_i32_0 : i32, i32
  }
  func.func @transform_4(%arg0: i32) -> (i32, i32) {
    %c0_i32 = arith.constant 0 : i32
    %c0_i32_0 = arith.constant 0 : i32
    %c0_i32_1 = arith.constant 0 : i32
    return %c0_i32, %c0_i32_0 : i32, i32
  }
  func.func @transform_5(%arg0: i32) -> (i32, i32) {
    %c0_i32 = arith.constant 0 : i32
    %c0_i32_0 = arith.constant 0 : i32
    %c0_i32_1 = arith.constant 0 : i32
    return %c0_i32, %c0_i32_0 : i32, i32
  }
  func.func @transform_6(%arg0: i32) -> (i32, i32) {
    %c0_i32 = arith.constant 0 : i32
    %c0_i32_0 = arith.constant 0 : i32
    %c0_i32_1 = arith.constant 0 : i32
    return %c0_i32, %c0_i32_0 : i32, i32
  }
  func.func @transform_7(%arg0: i32) -> (i32, i32) {
    %c0_i32 = arith.constant 0 : i32
    %c0_i32_0 = arith.constant 0 : i32
    %c0_i32_1 = arith.constant 0 : i32
    return %c0_i32, %c0_i32_0 : i32, i32
  }
  func.func @transform_8(%arg0: i32) -> (i32, i32) {
    %c0_i32 = arith.constant 0 : i32
    %c0_i32_0 = arith.constant 0 : i32
    %c0_i32_1 = arith.constant 0 : i32
    return %c0_i32, %c0_i32_0 : i32, i32
  }
  func.func @transform_9(%arg0: i32) -> (i32, i32, i32) {
    %c0_i32 = arith.constant 0 : i32
    %c0_i32_0 = arith.constant 0 : i32
    %c0_i32_1 = arith.constant 0 : i32
    return %arg0, %c0_i32, %c0_i32_0 : i32, i32, i32
  }
}

</mosaic_0001>

<llo_original>
// kernel: unbounded_grid_loc_net_forward.1
$region0: #{unbounded_grid_loc_net_forward.1}
  #allocation0 [shape = 'u32[]', space=smem, size = 0x4, offset = 0x4, fixed_abs, tag = 'smem constant byte address 0x4 - core index']
  #allocation1 [shape = 'u32[144,128]{1,0:T(1,128)}', space=vmem, size = 0x12000, scoped, tag = 'internal scratch']
  %s0 = inlined_call_operand.vmem [shape: f32[2,7,128], index: 0, kind: input, shape index: {}]
  %s1 = inlined_call_operand.vmem [shape: f32[256,1024], index: 1, kind: input, shape index: {}]
  %s2 = inlined_call_operand.vmem [shape: f32[1,1024], index: 2, kind: input, shape index: {}]
  %s3 = inlined_call_operand.vmem [shape: f32[768,512], index: 3, kind: input, shape index: {}]
  %s4 = inlined_call_operand.vmem [shape: f32[1,512], index: 4, kind: input, shape index: {}]
  %s5 = inlined_call_operand.vmem [shape: f32[512,50], index: 5, kind: input, shape index: {}]
  %s6 = inlined_call_operand.vmem [shape: f32[1,50], index: 6, kind: input, shape index: {}]
  %s7 = inlined_call_operand.vmem [shape: f32[50,32], index: 7, kind: input, shape index: {}]
  %s8 = inlined_call_operand.vmem [shape: f32[1,32], index: 8, kind: input, shape index: {}]
  %s9 = inlined_call_operand.vmem [shape: f32[2,1,32], index: 9, kind: output, shape index: {}]
  %s10 = sld [smem:[#allocation0]]
  $region69: #{unbounded_grid_loc_net_forward.1} parent=0
    _
  %s12 = ssub.s32 1, %s10
  %s13 = scalar_select 0, %s12, %s10
  loop: start=0, step=1, limit=4
  $region2: #{unbounded_grid_loc_net_forward.1} parent=0 // loop_pre_header
    _
  $region3: #{unbounded_grid_loc_net_forward.1} parent=0 // loop_header
    %s15 = sphi 0, %s19
    %p16 = scmp.ge.s32.totalorder %s15, 4
    %s25 = sphi 0, %s27
    %s28 = sphi 0, %s25
    %s29 = sphi 0, %s28
    %s45 = sphi 0, %s29
    %s49 = sphi 0, %s49
    %s51 = sphi 0, %s49
    %s52 = sphi 0, %s51
    %s66 = sphi 0, %s52
    %s70 = sphi 0, %s70
    %s72 = sphi 0, %s70
    %s73 = sphi 0, %s72
    %s87 = sphi 0, %s73
    %s91 = sphi 0, %s91
    %s93 = sphi 0, %s91
    %s94 = sphi 0, %s93
    %s108 = sphi 0, %s94
    %s112 = sphi 0, %s112
    %s114 = sphi 0, %s112
    %s115 = sphi 0, %s114
    %s129 = sphi 0, %s115
    %s133 = sphi 0, %s133
    %s135 = sphi 0, %s133
    %s136 = sphi 0, %s135
    %s150 = sphi 0, %s136
    %s154 = sphi 0, %s154
    %s156 = sphi 0, %s154
    %s157 = sphi 0, %s156
    %s171 = sphi 0, %s157
    %s175 = sphi 0, %s175
    %s177 = sphi 0, %s175
    %s178 = sphi 0, %s177
    %s192 = sphi 0, %s178
    %s196 = sphi 0, %s196
    %s198 = sphi 0, %s196
    %s199 = sphi 0, %s198
    %s213 = sphi 0, %s199
    %s219 = sphi 0, %s221
    %s222 = sphi 0, %s219
    %s223 = sphi 0, %s222
    %s239 = sphi 0, %s223
  $region4: #{unbounded_grid_loc_net_forward.1} parent=0 // loop_header_branch
    %18 = sbr.rel (%p16) target = $region8
  $region5: #{unbounded_grid_loc_net_forward.1} parent=0 // loop_body
    %s20 = ssub.s32 %s15, 1
    %s21 = ssub.s32 %s15, 2
    %s22 = sadd.s32 %s15, 1
    %s23 = ssub.s32 %s15, %s22
    %p24 = scmp.eq.s32.totalorder %s23, 0
    %s26 = sadd.s32 %s25, 1
    %s27 = scalar_select %p24, %s25, %s26
    %p30 = pneg %p24
    %p31 = scmp.eq.s32.totalorder %s15, 1
    %p32 = por %p30, %p31
    %p33 = scmp.ne.s32.totalorder %s25, %s28
    %p34 = scmp.eq.s32.totalorder %s15, 0
    %p35 = por %p33, %p34
    %p36 = scmp.ne.s32.totalorder %s25, %s28
    %p37 = scmp.eq.s32.totalorder %s20, 1
    %p38 = por %p36, %p37
    %p39 = scmp.ne.s32.totalorder %s28, %s29
    %p40 = scmp.eq.s32.totalorder %s20, 0
    %p41 = por %p39, %p40
    %p42 = scmp.ne.s32.totalorder %s28, %s29
    %p43 = scmp.eq.s32.totalorder %s21, 1
    %p44 = por %p42, %p43
    %p46 = scmp.ne.s32.totalorder %s29, %s45
    %p47 = scmp.eq.s32.totalorder %s21, 0
    %p48 = por %p46, %p47
    %s50 = sadd.s32 %s49, 1
    %p53 = scmp.eq.s32.totalorder %s15, 1
    %p54 = scmp.ne.s32.totalorder %s49, %s51
    %p55 = scmp.eq.s32.totalorder %s15, 0
    %p56 = por %p54, %p55
    %p57 = scmp.ne.s32.totalorder %s49, %s51
    %p58 = scmp.eq.s32.totalorder %s20, 1
    %p59 = por %p57, %p58
    %p60 = scmp.ne.s32.totalorder %s51, %s52
    %p61 = scmp.eq.s32.totalorder %s20, 0
    %p62 = por %p60, %p61
    %p63 = scmp.ne.s32.totalorder %s51, %s52
    %p64 = scmp.eq.s32.totalorder %s21, 1
    %p65 = por %p63, %p64
    %p67 = scmp.ne.s32.totalorder %s52, %s66
    %p68 = scmp.eq.s32.totalorder %s21, 0
    %p69 = por %p67, %p68
    %s71 = sadd.s32 %s70, 1
    %p74 = scmp.eq.s32.totalorder %s15, 1
    %p75 = scmp.ne.s32.totalorder %s70, %s72
    %p76 = scmp.eq.s32.totalorder %s15, 0
    %p77 = por %p75, %p76
    %p78 = scmp.ne.s32.totalorder %s70, %s72
    %p79 = scmp.eq.s32.totalorder %s20, 1
    %p80 = por %p78, %p79
    %p81 = scmp.ne.s32.totalorder %s72, %s73
    %p82 = scmp.eq.s32.totalorder %s20, 0
    %p83 = por %p81, %p82
    %p84 = scmp.ne.s32.totalorder %s72, %s73
    %p85 = scmp.eq.s32.totalorder %s21, 1
    %p86 = por %p84, %p85
    %p88 = scmp.ne.s32.totalorder %s73, %s87
    %p89 = scmp.eq.s32.totalorder %s21, 0
    %p90 = por %p88, %p89
    %s92 = sadd.s32 %s91, 1
    %p95 = scmp.eq.s32.totalorder %s15, 1
    %p96 = scmp.ne.s32.totalorder %s91, %s93
    %p97 = scmp.eq.s32.totalorder %s15, 0
    %p98 = por %p96, %p97
    %p99 = scmp.ne.s32.totalorder %s91, %s93
    %p100 = scmp.eq.s32.totalorder %s20, 1
    %p101 = por %p99, %p100
    %p102 = scmp.ne.s32.totalorder %s93, %s94
    %p103 = scmp.eq.s32.totalorder %s20, 0
    %p104 = por %p102, %p103
    %p105 = scmp.ne.s32.totalorder %s93, %s94
    %p106 = scmp.eq.s32.totalorder %s21, 1
    %p107 = por %p105, %p106
    %p109 = scmp.ne.s32.totalorder %s94, %s108
    %p110 = scmp.eq.s32.totalorder %s21, 0
    %p111 = por %p109, %p110
    %s113 = sadd.s32 %s112, 1
    %p116 = scmp.eq.s32.totalorder %s15, 1
    %p117 = scmp.ne.s32.totalorder %s112, %s114
    %p118 = scmp.eq.s32.totalorder %s15, 0
    %p119 = por %p117, %p118
    %p120 = scmp.ne.s32.totalorder %s112, %s114
    %p121 = scmp.eq.s32.totalorder %s20, 1
    %p122 = por %p120, %p121
    %p123 = scmp.ne.s32.totalorder %s114, %s115
    %p124 = scmp.eq.s32.totalorder %s20, 0
    %p125 = por %p123, %p124
    %p126 = scmp.ne.s32.totalorder %s114, %s115
    %p127 = scmp.eq.s32.totalorder %s21, 1
    %p128 = por %p126, %p127
    %p130 = scmp.ne.s32.totalorder %s115, %s129
    %p131 = scmp.eq.s32.totalorder %s21, 0
    %p132 = por %p130, %p131
    %s134 = sadd.s32 %s133, 1
    %p137 = scmp.eq.s32.totalorder %s15, 1
    %p138 = scmp.ne.s32.totalorder %s133, %s135
    %p139 = scmp.eq.s32.totalorder %s15, 0
    %p140 = por %p138, %p139
    %p141 = scmp.ne.s32.totalorder %s133, %s135
    %p142 = scmp.eq.s32.totalorder %s20, 1
    %p143 = por %p141, %p142
    %p144 = scmp.ne.s32.totalorder %s135, %s136
    %p145 = scmp.eq.s32.totalorder %s20, 0
    %p146 = por %p144, %p145
    %p147 = scmp.ne.s32.totalorder %s135, %s136
    %p148 = scmp.eq.s32.totalorder %s21, 1
    %p149 = por %p147, %p148
    %p151 = scmp.ne.s32.totalorder %s136, %s150
    %p152 = scmp.eq.s32.totalorder %s21, 0
    %p153 = por %p151, %p152
    %s155 = sadd.s32 %s154, 1
    %p158 = scmp.eq.s32.totalorder %s15, 1
    %p159 = scmp.ne.s32.totalorder %s154, %s156
    %p160 = scmp.eq.s32.totalorder %s15, 0
    %p161 = por %p159, %p160
    %p162 = scmp.ne.s32.totalorder %s154, %s156
    %p163 = scmp.eq.s32.totalorder %s20, 1
    %p164 = por %p162, %p163
    %p165 = scmp.ne.s32.totalorder %s156, %s157
    %p166 = scmp.eq.s32.totalorder %s20, 0
    %p167 = por %p165, %p166
    %p168 = scmp.ne.s32.totalorder %s156, %s157
    %p169 = scmp.eq.s32.totalorder %s21, 1
    %p170 = por %p168, %p169
    %p172 = scmp.ne.s32.totalorder %s157, %s171
    %p173 = scmp.eq.s32.totalorder %s21, 0
    %p174 = por %p172, %p173
    %s176 = sadd.s32 %s175, 1
    %p179 = scmp.eq.s32.totalorder %s15, 1
    %p180 = scmp.ne.s32.totalorder %s175, %s177
    %p181 = scmp.eq.s32.totalorder %s15, 0
    %p182 = por %p180, %p181
    %p183 = scmp.ne.s32.totalorder %s175, %s177
    %p184 = scmp.eq.s32.totalorder %s20, 1
    %p185 = por %p183, %p184
    %p186 = scmp.ne.s32.totalorder %s177, %s178
    %p187 = scmp.eq.s32.totalorder %s20, 0
    %p188 = por %p186, %p187
    %p189 = scmp.ne.s32.totalorder %s177, %s178
    %p190 = scmp.eq.s32.totalorder %s21, 1
    %p191 = por %p189, %p190
    %p193 = scmp.ne.s32.totalorder %s178, %s192
    %p194 = scmp.eq.s32.totalorder %s21, 0
    %p195 = por %p193, %p194
    %s197 = sadd.s32 %s196, 1
    %p200 = scmp.eq.s32.totalorder %s15, 1
    %p201 = scmp.ne.s32.totalorder %s196, %s198
    %p202 = scmp.eq.s32.totalorder %s15, 0
    %p203 = por %p201, %p202
    %p204 = scmp.ne.s32.totalorder %s196, %s198
    %p205 = scmp.eq.s32.totalorder %s20, 1
    %p206 = por %p204, %p205
    %p207 = scmp.ne.s32.totalorder %s198, %s199
    %p208 = scmp.eq.s32.totalorder %s20, 0
    %p209 = por %p207, %p208
    %p210 = scmp.ne.s32.totalorder %s198, %s199
    %p211 = scmp.eq.s32.totalorder %s21, 1
    %p212 = por %p210, %p211
    %p214 = scmp.ne.s32.totalorder %s199, %s213
    %p215 = scmp.eq.s32.totalorder %s21, 0
    %p216 = por %p214, %p215
    %s217 = ssub.s32 %s15, %s22
    %p218 = scmp.eq.s32.totalorder %s217, 0
    %s220 = sadd.s32 %s219, 1
    %s221 = scalar_select %p218, %s219, %s220
    %p224 = pneg %p218
    %p225 = scmp.eq.s32.totalorder %s15, 1
    %p226 = por %p224, %p225
    %p227 = scmp.ne.s32.totalorder %s219, %s222
    %p228 = scmp.eq.s32.totalorder %s15, 0
    %p229 = por %p227, %p228
    %p230 = scmp.ne.s32.totalorder %s219, %s222
    %p231 = scmp.eq.s32.totalorder %s20, 1
    %p232 = por %p230, %p231
    %p233 = scmp.ne.s32.totalorder %s222, %s223
    %p234 = scmp.eq.s32.totalorder %s20, 0
    %p235 = por %p233, %p234
    %p236 = scmp.ne.s32.totalorder %s222, %s223
    %p237 = scmp.eq.s32.totalorder %s21, 1
    %p238 = por %p236, %p237
    %p240 = scmp.ne.s32.totalorder %s223, %s239
    %p241 = scmp.eq.s32.totalorder %s21, 0
    %p242 = por %p240, %p241
    %p243 = scmp.le.s32.totalorder 1, %s15
    %p244 = scmp.lt.s32.totalorder %s15, 3
    %p245 = pnand %p243, %p244
    %p246 = pneg %p245
    // Predicated region
    $region9: #{unbounded_grid_loc_net_forward.1} parent=5 // pred_check
      _
    $region10: #{unbounded_grid_loc_net_forward.1} parent=5 // pred_check_branch
      %248 = sbr.rel (%p245) target = $region12
    $region11: #{unbounded_grid_loc_net_forward.1} parent=5 // pred_region
      %s249 = ssub.s32 %s15, 1
      // Predicated region
      $region13: #{unbounded_grid_loc_net_forward.1} parent=11 // pred_check
        %p250 = pneg %p62
      $region14: #{unbounded_grid_loc_net_forward.1} parent=11 // pred_check_branch
        %252 = sbr.rel (%p250) target = $region16
      $region15: #{unbounded_grid_loc_net_forward.1} parent=11 // pred_region
        _
      $region16: #{unbounded_grid_loc_net_forward.1} parent=11 // pred_fallthru
        _
      // Predicated region
      $region17: #{unbounded_grid_loc_net_forward.1} parent=11 // pred_check
        %p253 = pneg %p83
      $region18: #{unbounded_grid_loc_net_forward.1} parent=11 // pred_check_branch
        %255 = sbr.rel (%p253) target = $region20
      $region19: #{unbounded_grid_loc_net_forward.1} parent=11 // pred_region
        _
      $region20: #{unbounded_grid_loc_net_forward.1} parent=11 // pred_fallthru
        _
      // Predicated region
      $region21: #{unbounded_grid_loc_net_forward.1} parent=11 // pred_check
        %p256 = pneg %p104
      $region22: #{unbounded_grid_loc_net_forward.1} parent=11 // pred_check_branch
        %258 = sbr.rel (%p256) target = $region24
      $region23: #{unbounded_grid_loc_net_forward.1} parent=11 // pred_region
        _
      $region24: #{unbounded_grid_loc_net_forward.1} parent=11 // pred_fallthru
        _
      // Predicated region
      $region25: #{unbounded_grid_loc_net_forward.1} parent=11 // pred_check
        %p259 = pneg %p125
      $region26: #{unbounded_grid_loc_net_forward.1} parent=11 // pred_check_branch
        %261 = sbr.rel (%p259) target = $region28
      $region27: #{unbounded_grid_loc_net_forward.1} parent=11 // pred_region
        _
      $region28: #{unbounded_grid_loc_net_forward.1} parent=11 // pred_fallthru
        _
      // Predicated region
      $region29: #{unbounded_grid_loc_net_forward.1} parent=11 // pred_check
        %p262 = pneg %p146
      $region30: #{unbounded_grid_loc_net_forward.1} parent=11 // pred_check_branch
        %264 = sbr.rel (%p262) target = $region32
      $region31: #{unbounded_grid_loc_net_forward.1} parent=11 // pred_region
        _
      $region32: #{unbounded_grid_loc_net_forward.1} parent=11 // pred_fallthru
        _
      // Predicated region
      $region33: #{unbounded_grid_loc_net_forward.1} parent=11 // pred_check
        %p265 = pneg %p167
      $region34: #{unbounded_grid_loc_net_forward.1} parent=11 // pred_check_branch
        %267 = sbr.rel (%p265) target = $region36
      $region35: #{unbounded_grid_loc_net_forward.1} parent=11 // pred_region
        _
      $region36: #{unbounded_grid_loc_net_forward.1} parent=11 // pred_fallthru
        _
      // Predicated region
      $region37: #{unbounded_grid_loc_net_forward.1} parent=11 // pred_check
        %p268 = pneg %p188
      $region38: #{unbounded_grid_loc_net_forward.1} parent=11 // pred_check_branch
        %270 = sbr.rel (%p268) target = $region40
      $region39: #{unbounded_grid_loc_net_forward.1} parent=11 // pred_region
        _
      $region40: #{unbounded_grid_loc_net_forward.1} parent=11 // pred_fallthru
        _
      // Predicated region
      $region41: #{unbounded_grid_loc_net_forward.1} parent=11 // pred_check
        %p271 = pneg %p209
      $region42: #{unbounded_grid_loc_net_forward.1} parent=11 // pred_check_branch
        %273 = sbr.rel (%p271) target = $region44
      $region43: #{unbounded_grid_loc_net_forward.1} parent=11 // pred_region
        _
      $region44: #{unbounded_grid_loc_net_forward.1} parent=11 // pred_fallthru
        _
    $region12: #{unbounded_grid_loc_net_forward.1} parent=5 // pred_fallthru
      _
    %p274 = scmp.lt.s32.totalorder %s15, 2
    // Predicated region
    $region45: #{unbounded_grid_loc_net_forward.1} parent=5 // pred_check
      %p275 = pneg %p274
    $region46: #{unbounded_grid_loc_net_forward.1} parent=5 // pred_check_branch
      %277 = sbr.rel (%p275) target = $region48
    $region47: #{unbounded_grid_loc_net_forward.1} parent=5 // pred_region
      // Predicated region
      $region49: #{unbounded_grid_loc_net_forward.1} parent=47 // pred_check
        %p278 = pneg %p35
      $region50: #{unbounded_grid_loc_net_forward.1} parent=47 // pred_check_branch
        %280 = sbr.rel (%p278) target = $region52
      $region51: #{unbounded_grid_loc_net_forward.1} parent=47 // pred_region
        %p281 = scmp.lt.s32.totalorder %s15, 1
        %s282 = scalar_select %p281, %s15, 1
        %s283 = smul.addr %s282, 8
        %s284 = scalar_lea.vmem %s0, %s283
      $region52: #{unbounded_grid_loc_net_forward.1} parent=47 // pred_fallthru
        _
    $region48: #{unbounded_grid_loc_net_forward.1} parent=5 // pred_fallthru
      _
    %p285 = scmp.le.s32.totalorder 1, %s15
    %p286 = scmp.lt.s32.totalorder %s15, 3
    %p287 = pnand %p285, %p286
    %p288 = pneg %p287
    // Predicated region
    $region53: #{unbounded_grid_loc_net_forward.1} parent=5 // pred_check
      _
    $region54: #{unbounded_grid_loc_net_forward.1} parent=5 // pred_check_branch
      %290 = sbr.rel (%p287) target = $region56
    $region55: #{unbounded_grid_loc_net_forward.1} parent=5 // pred_region
      %s291 = ssub.s32 %s15, 1
      %p292 = scmp.lt.s32.totalorder %s20, 1
      %s293 = scalar_select %p292, %s20, 1
      %s294 = smul.addr %s293, 8
      %s295 = scalar_lea.vmem %s0, %s294
      %p296 = pneg %p41
      %p297 = pneg %p38
      %p298 = pneg %p62
      %p299 = pneg %p59
      %p300 = pneg %p83
      %p301 = pneg %p80
      %p302 = pneg %p104
      %p303 = pneg %p101
      %p304 = pneg %p125
      %p305 = pneg %p122
      %p306 = pneg %p146
      %p307 = pneg %p143
      %p308 = pneg %p167
      %p309 = pneg %p164
      %p310 = pneg %p188
      %p311 = pneg %p185
      %p312 = pneg %p209
      %p313 = pneg %p206
      %p314 = pneg %p235
      %p315 = pneg %p232
      %p316 = scmp.lt.s32.totalorder %s20, 1
      %s317 = scalar_select %p316, %s20, 1
      %s318 = scalar_lea.vmem %s9, %s317
      %p319 = scmp.lt.s32.totalorder %s20, 1
      %s320 = scalar_select %p319, %s20, 1
      %s321 = smul.addr %s320, 8
      %s322 = scalar_lea.vmem %s0, %s321
      %p323 = scmp.lt.s32.totalorder %s20, 1
      %s324 = scalar_select %p323, %s20, 1
      %s325 = scalar_lea.vmem %s9, %s324
      %v326 = vld [vmem:[%s322] sm:$0x7f]
      %v328 = vrot.slane %v326, 1
      %v330 = vld [vmem:[%s1] sm:$0xff]
      %v331 = vld [vmem:[%s1 + $0x8] sm:$0xff]
      %v332 = vld [vmem:[%s1 + $0x10] sm:$0xff]
      %v333 = vld [vmem:[%s1 + $0x18] sm:$0xff]
      %v334 = vld [vmem:[%s1 + $0x20] sm:$0xff]
      %v335 = vld [vmem:[%s1 + $0x28] sm:$0xff]
      %v336 = vld [vmem:[%s1 + $0x30] sm:$0xff]
      %v337 = vld [vmem:[%s1 + $0x38] sm:$0xff]
      %v338 = vld [vmem:[%s1 + $0x40] sm:$0xff]
      %v339 = vld [vmem:[%s1 + $0x48] sm:$0xff]
      %v340 = vld [vmem:[%s1 + $0x50] sm:$0xff]
      %v341 = vld [vmem:[%s1 + $0x58] sm:$0xff]
      %v342 = vld [vmem:[%s1 + $0x60] sm:$0xff]
      %v343 = vld [vmem:[%s1 + $0x68] sm:$0xff]
      %v344 = vld [vmem:[%s1 + $0x70] sm:$0xff]
      %v345 = vld [vmem:[%s1 + $0x78] sm:$0xff]
      %v346 = vld [vmem:[%s1 + $0x80] sm:$0xff]
      %v347 = vld [vmem:[%s1 + $0x88] sm:$0xff]
      %v348 = vld [vmem:[%s1 + $0x90] sm:$0xff]
      %v349 = vld [vmem:[%s1 + $0x98] sm:$0xff]
      %v350 = vld [vmem:[%s1 + $0xa0] sm:$0xff]
      %v351 = vld [vmem:[%s1 + $0xa8] sm:$0xff]
      %v352 = vld [vmem:[%s1 + $0xb0] sm:$0xff]
      %v353 = vld [vmem:[%s1 + $0xb8] sm:$0xff]
      %v354 = vld [vmem:[%s1 + $0xc0] sm:$0xff]
      %v355 = vld [vmem:[%s1 + $0xc8] sm:$0xff]
      %v356 = vld [vmem:[%s1 + $0xd0] sm:$0xff]
      %v357 = vld [vmem:[%s1 + $0xd8] sm:$0xff]
      %v358 = vld [vmem:[%s1 + $0xe0] sm:$0xff]
      %v359 = vld [vmem:[%s1 + $0xe8] sm:$0xff]
      %v360 = vld [vmem:[%s1 + $0xf0] sm:$0xff]
      %v361 = vld [vmem:[%s1 + $0xf8] sm:$0xff]
      %v362 = vld [vmem:[%s1 + $0x100] sm:$0xff]
      %v363 = vld [vmem:[%s1 + $0x108] sm:$0xff]
      %v364 = vld [vmem:[%s1 + $0x110] sm:$0xff]
      %v365 = vld [vmem:[%s1 + $0x118] sm:$0xff]
      %v366 = vld [vmem:[%s1 + $0x120] sm:$0xff]
      %v367 = vld [vmem:[%s1 + $0x128] sm:$0xff]
      %v368 = vld [vmem:[%s1 + $0x130] sm:$0xff]
      %v369 = vld [vmem:[%s1 + $0x138] sm:$0xff]
      %v370 = vld [vmem:[%s1 + $0x140] sm:$0xff]
      %v371 = vld [vmem:[%s1 + $0x148] sm:$0xff]
      %v372 = vld [vmem:[%s1 + $0x150] sm:$0xff]
      %v373 = vld [vmem:[%s1 + $0x158] sm:$0xff]
      %v374 = vld [vmem:[%s1 + $0x160] sm:$0xff]
      %v375 = vld [vmem:[%s1 + $0x168] sm:$0xff]
      %v376 = vld [vmem:[%s1 + $0x170] sm:$0xff]
      %v377 = vld [vmem:[%s1 + $0x178] sm:$0xff]
      %v378 = vld [vmem:[%s1 + $0x180] sm:$0xff]
      %v379 = vld [vmem:[%s1 + $0x188] sm:$0xff]
      %v380 = vld [vmem:[%s1 + $0x190] sm:$0xff]
      %v381 = vld [vmem:[%s1 + $0x198] sm:$0xff]
      %v382 = vld [vmem:[%s1 + $0x1a0] sm:$0xff]
      %v383 = vld [vmem:[%s1 + $0x1a8] sm:$0xff]
      %v384 = vld [vmem:[%s1 + $0x1b0] sm:$0xff]
      %v385 = vld [vmem:[%s1 + $0x1b8] sm:$0xff]
      %v386 = vld [vmem:[%s1 + $0x1c0] sm:$0xff]
      %v387 = vld [vmem:[%s1 + $0x1c8] sm:$0xff]
      %v388 = vld [vmem:[%s1 + $0x1d0] sm:$0xff]
      %v389 = vld [vmem:[%s1 + $0x1d8] sm:$0xff]
      %v390 = vld [vmem:[%s1 + $0x1e0] sm:$0xff]
      %v391 = vld [vmem:[%s1 + $0x1e8] sm:$0xff]
      %v392 = vld [vmem:[%s1 + $0x1f0] sm:$0xff]
      %v393 = vld [vmem:[%s1 + $0x1f8] sm:$0xff]
      %v394 = vld [vmem:[%s1 + $0x200] sm:$0xff]
      %v395 = vld [vmem:[%s1 + $0x208] sm:$0xff]
      %v396 = vld [vmem:[%s1 + $0x210] sm:$0xff]
      %v397 = vld [vmem:[%s1 + $0x218] sm:$0xff]
      %v398 = vld [vmem:[%s1 + $0x220] sm:$0xff]
      %v399 = vld [vmem:[%s1 + $0x228] sm:$0xff]
      %v400 = vld [vmem:[%s1 + $0x230] sm:$0xff]
      %v401 = vld [vmem:[%s1 + $0x238] sm:$0xff]
      %v402 = vld [vmem:[%s1 + $0x240] sm:$0xff]
      %v403 = vld [vmem:[%s1 + $0x248] sm:$0xff]
      %v404 = vld [vmem:[%s1 + $0x250] sm:$0xff]
      %v405 = vld [vmem:[%s1 + $0x258] sm:$0xff]
      %v406 = vld [vmem:[%s1 + $0x260] sm:$0xff]
      %v407 = vld [vmem:[%s1 + $0x268] sm:$0xff]
      %v408 = vld [vmem:[%s1 + $0x270] sm:$0xff]
      %v409 = vld [vmem:[%s1 + $0x278] sm:$0xff]
      %v410 = vld [vmem:[%s1 + $0x280] sm:$0xff]
      %v411 = vld [vmem:[%s1 + $0x288] sm:$0xff]
      %v412 = vld [vmem:[%s1 + $0x290] sm:$0xff]
      %v413 = vld [vmem:[%s1 + $0x298] sm:$0xff]
      %v414 = vld [vmem:[%s1 + $0x2a0] sm:$0xff]
      %v415 = vld [vmem:[%s1 + $0x2a8] sm:$0xff]
      %v416 = vld [vmem:[%s1 + $0x2b0] sm:$0xff]
      %v417 = vld [vmem:[%s1 + $0x2b8] sm:$0xff]
      %v418 = vld [vmem:[%s1 + $0x2c0] sm:$0xff]
      %v419 = vld [vmem:[%s1 + $0x2c8] sm:$0xff]
      %v420 = vld [vmem:[%s1 + $0x2d0] sm:$0xff]
      %v421 = vld [vmem:[%s1 + $0x2d8] sm:$0xff]
      %v422 = vld [vmem:[%s1 + $0x2e0] sm:$0xff]
      %v423 = vld [vmem:[%s1 + $0x2e8] sm:$0xff]
      %v424 = vld [vmem:[%s1 + $0x2f0] sm:$0xff]
      %v425 = vld [vmem:[%s1 + $0x2f8] sm:$0xff]
      %v426 = vld [vmem:[%s1 + $0x300] sm:$0xff]
      %v427 = vld [vmem:[%s1 + $0x308] sm:$0xff]
      %v428 = vld [vmem:[%s1 + $0x310] sm:$0xff]
      %v429 = vld [vmem:[%s1 + $0x318] sm:$0xff]
      %v430 = vld [vmem:[%s1 + $0x320] sm:$0xff]
      %v431 = vld [vmem:[%s1 + $0x328] sm:$0xff]
      %v432 = vld [vmem:[%s1 + $0x330] sm:$0xff]
      %v433 = vld [vmem:[%s1 + $0x338] sm:$0xff]
      %v434 = vld [vmem:[%s1 + $0x340] sm:$0xff]
      %v435 = vld [vmem:[%s1 + $0x348] sm:$0xff]
      %v436 = vld [vmem:[%s1 + $0x350] sm:$0xff]
      %v437 = vld [vmem:[%s1 + $0x358] sm:$0xff]
      %v438 = vld [vmem:[%s1 + $0x360] sm:$0xff]
      %v439 = vld [vmem:[%s1 + $0x368] sm:$0xff]
      %v440 = vld [vmem:[%s1 + $0x370] sm:$0xff]
      %v441 = vld [vmem:[%s1 + $0x378] sm:$0xff]
      %v442 = vld [vmem:[%s1 + $0x380] sm:$0xff]
      %v443 = vld [vmem:[%s1 + $0x388] sm:$0xff]
      %v444 = vld [vmem:[%s1 + $0x390] sm:$0xff]
      %v445 = vld [vmem:[%s1 + $0x398] sm:$0xff]
      %v446 = vld [vmem:[%s1 + $0x3a0] sm:$0xff]
      %v447 = vld [vmem:[%s1 + $0x3a8] sm:$0xff]
      %v448 = vld [vmem:[%s1 + $0x3b0] sm:$0xff]
      %v449 = vld [vmem:[%s1 + $0x3b8] sm:$0xff]
      %v450 = vld [vmem:[%s1 + $0x3c0] sm:$0xff]
      %v451 = vld [vmem:[%s1 + $0x3c8] sm:$0xff]
      %v452 = vld [vmem:[%s1 + $0x3d0] sm:$0xff]
      %v453 = vld [vmem:[%s1 + $0x3d8] sm:$0xff]
      %v454 = vld [vmem:[%s1 + $0x3e0] sm:$0xff]
      %v455 = vld [vmem:[%s1 + $0x3e8] sm:$0xff]
      %v456 = vld [vmem:[%s1 + $0x3f0] sm:$0xff]
      %v457 = vld [vmem:[%s1 + $0x3f8] sm:$0xff]
      %v458 = vld [vmem:[%s1 + $0x400] sm:$0xff]
      %v459 = vld [vmem:[%s1 + $0x408] sm:$0xff]
      %v460 = vld [vmem:[%s1 + $0x410] sm:$0xff]
      %v461 = vld [vmem:[%s1 + $0x418] sm:$0xff]
      %v462 = vld [vmem:[%s1 + $0x420] sm:$0xff]
      %v463 = vld [vmem:[%s1 + $0x428] sm:$0xff]
      %v464 = vld [vmem:[%s1 + $0x430] sm:$0xff]
      %v465 = vld [vmem:[%s1 + $0x438] sm:$0xff]
      %v466 = vld [vmem:[%s1 + $0x440] sm:$0xff]
      %v467 = vld [vmem:[%s1 + $0x448] sm:$0xff]
      %v468 = vld [vmem:[%s1 + $0x450] sm:$0xff]
      %v469 = vld [vmem:[%s1 + $0x458] sm:$0xff]
      %v470 = vld [vmem:[%s1 + $0x460] sm:$0xff]
      %v471 = vld [vmem:[%s1 + $0x468] sm:$0xff]
      %v472 = vld [vmem:[%s1 + $0x470] sm:$0xff]
      %v473 = vld [vmem:[%s1 + $0x478] sm:$0xff]
      %v474 = vld [vmem:[%s1 + $0x480] sm:$0xff]
      %v475 = vld [vmem:[%s1 + $0x488] sm:$0xff]
      %v476 = vld [vmem:[%s1 + $0x490] sm:$0xff]
      %v477 = vld [vmem:[%s1 + $0x498] sm:$0xff]
      %v478 = vld [vmem:[%s1 + $0x4a0] sm:$0xff]
      %v479 = vld [vmem:[%s1 + $0x4a8] sm:$0xff]
      %v480 = vld [vmem:[%s1 + $0x4b0] sm:$0xff]
      %v481 = vld [vmem:[%s1 + $0x4b8] sm:$0xff]
      %v482 = vld [vmem:[%s1 + $0x4c0] sm:$0xff]
      %v483 = vld [vmem:[%s1 + $0x4c8] sm:$0xff]
      %v484 = vld [vmem:[%s1 + $0x4d0] sm:$0xff]
      %v485 = vld [vmem:[%s1 + $0x4d8] sm:$0xff]
      %v486 = vld [vmem:[%s1 + $0x4e0] sm:$0xff]
      %v487 = vld [vmem:[%s1 + $0x4e8] sm:$0xff]
      %v488 = vld [vmem:[%s1 + $0x4f0] sm:$0xff]
      %v489 = vld [vmem:[%s1 + $0x4f8] sm:$0xff]
      %v490 = vld [vmem:[%s1 + $0x500] sm:$0xff]
      %v491 = vld [vmem:[%s1 + $0x508] sm:$0xff]
      %v492 = vld [vmem:[%s1 + $0x510] sm:$0xff]
      %v493 = vld [vmem:[%s1 + $0x518] sm:$0xff]
      %v494 = vld [vmem:[%s1 + $0x520] sm:$0xff]
      %v495 = vld [vmem:[%s1 + $0x528] sm:$0xff]
      %v496 = vld [vmem:[%s1 + $0x530] sm:$0xff]
      %v497 = vld [vmem:[%s1 + $0x538] sm:$0xff]
      %v498 = vld [vmem:[%s1 + $0x540] sm:$0xff]
      %v499 = vld [vmem:[%s1 + $0x548] sm:$0xff]
      %v500 = vld [vmem:[%s1 + $0x550] sm:$0xff]
      %v501 = vld [vmem:[%s1 + $0x558] sm:$0xff]
      %v502 = vld [vmem:[%s1 + $0x560] sm:$0xff]
      %v503 = vld [vmem:[%s1 + $0x568] sm:$0xff]
      %v504 = vld [vmem:[%s1 + $0x570] sm:$0xff]
      %v505 = vld [vmem:[%s1 + $0x578] sm:$0xff]
      %v506 = vld [vmem:[%s1 + $0x580] sm:$0xff]
      %v507 = vld [vmem:[%s1 + $0x588] sm:$0xff]
      %v508 = vld [vmem:[%s1 + $0x590] sm:$0xff]
      %v509 = vld [vmem:[%s1 + $0x598] sm:$0xff]
      %v510 = vld [vmem:[%s1 + $0x5a0] sm:$0xff]
      %v511 = vld [vmem:[%s1 + $0x5a8] sm:$0xff]
      %v512 = vld [vmem:[%s1 + $0x5b0] sm:$0xff]
      %v513 = vld [vmem:[%s1 + $0x5b8] sm:$0xff]
      %v514 = vld [vmem:[%s1 + $0x5c0] sm:$0xff]
      %v515 = vld [vmem:[%s1 + $0x5c8] sm:$0xff]
      %v516 = vld [vmem:[%s1 + $0x5d0] sm:$0xff]
      %v517 = vld [vmem:[%s1 + $0x5d8] sm:$0xff]
      %v518 = vld [vmem:[%s1 + $0x5e0] sm:$0xff]
      %v519 = vld [vmem:[%s1 + $0x5e8] sm:$0xff]
      %v520 = vld [vmem:[%s1 + $0x5f0] sm:$0xff]
      %v521 = vld [vmem:[%s1 + $0x5f8] sm:$0xff]
      %v522 = vld [vmem:[%s1 + $0x600] sm:$0xff]
      %v523 = vld [vmem:[%s1 + $0x608] sm:$0xff]
      %v524 = vld [vmem:[%s1 + $0x610] sm:$0xff]
      %v525 = vld [vmem:[%s1 + $0x618] sm:$0xff]
      %v526 = vld [vmem:[%s1 + $0x620] sm:$0xff]
      %v527 = vld [vmem:[%s1 + $0x628] sm:$0xff]
      %v528 = vld [vmem:[%s1 + $0x630] sm:$0xff]
      %v529 = vld [vmem:[%s1 + $0x638] sm:$0xff]
      %v530 = vld [vmem:[%s1 + $0x640] sm:$0xff]
      %v531 = vld [vmem:[%s1 + $0x648] sm:$0xff]
      %v532 = vld [vmem:[%s1 + $0x650] sm:$0xff]
      %v533 = vld [vmem:[%s1 + $0x658] sm:$0xff]
      %v534 = vld [vmem:[%s1 + $0x660] sm:$0xff]
      %v535 = vld [vmem:[%s1 + $0x668] sm:$0xff]
      %v536 = vld [vmem:[%s1 + $0x670] sm:$0xff]
      %v537 = vld [vmem:[%s1 + $0x678] sm:$0xff]
      %v538 = vld [vmem:[%s1 + $0x680] sm:$0xff]
      %v539 = vld [vmem:[%s1 + $0x688] sm:$0xff]
      %v540 = vld [vmem:[%s1 + $0x690] sm:$0xff]
      %v541 = vld [vmem:[%s1 + $0x698] sm:$0xff]
      %v542 = vld [vmem:[%s1 + $0x6a0] sm:$0xff]
      %v543 = vld [vmem:[%s1 + $0x6a8] sm:$0xff]
      %v544 = vld [vmem:[%s1 + $0x6b0] sm:$0xff]
      %v545 = vld [vmem:[%s1 + $0x6b8] sm:$0xff]
      %v546 = vld [vmem:[%s1 + $0x6c0] sm:$0xff]
      %v547 = vld [vmem:[%s1 + $0x6c8] sm:$0xff]
      %v548 = vld [vmem:[%s1 + $0x6d0] sm:$0xff]
      %v549 = vld [vmem:[%s1 + $0x6d8] sm:$0xff]
      %v550 = vld [vmem:[%s1 + $0x6e0] sm:$0xff]
      %v551 = vld [vmem:[%s1 + $0x6e8] sm:$0xff]
      %v552 = vld [vmem:[%s1 + $0x6f0] sm:$0xff]
      %v553 = vld [vmem:[%s1 + $0x6f8] sm:$0xff]
      %v554 = vld [vmem:[%s1 + $0x700] sm:$0xff]
      %v555 = vld [vmem:[%s1 + $0x708] sm:$0xff]
      %v556 = vld [vmem:[%s1 + $0x710] sm:$0xff]
      %v557 = vld [vmem:[%s1 + $0x718] sm:$0xff]
      %v558 = vld [vmem:[%s1 + $0x720] sm:$0xff]
      %v559 = vld [vmem:[%s1 + $0x728] sm:$0xff]
      %v560 = vld [vmem:[%s1 + $0x730] sm:$0xff]
      %v561 = vld [vmem:[%s1 + $0x738] sm:$0xff]
      %v562 = vld [vmem:[%s1 + $0x740] sm:$0xff]
      %v563 = vld [vmem:[%s1 + $0x748] sm:$0xff]
      %v564 = vld [vmem:[%s1 + $0x750] sm:$0xff]
      %v565 = vld [vmem:[%s1 + $0x758] sm:$0xff]
      %v566 = vld [vmem:[%s1 + $0x760] sm:$0xff]
      %v567 = vld [vmem:[%s1 + $0x768] sm:$0xff]
      %v568 = vld [vmem:[%s1 + $0x770] sm:$0xff]
      %v569 = vld [vmem:[%s1 + $0x778] sm:$0xff]
      %v570 = vld [vmem:[%s1 + $0x780] sm:$0xff]
      %v571 = vld [vmem:[%s1 + $0x788] sm:$0xff]
      %v572 = vld [vmem:[%s1 + $0x790] sm:$0xff]
      %v573 = vld [vmem:[%s1 + $0x798] sm:$0xff]
      %v574 = vld [vmem:[%s1 + $0x7a0] sm:$0xff]
      %v575 = vld [vmem:[%s1 + $0x7a8] sm:$0xff]
      %v576 = vld [vmem:[%s1 + $0x7b0] sm:$0xff]
      %v577 = vld [vmem:[%s1 + $0x7b8] sm:$0xff]
      %v578 = vld [vmem:[%s1 + $0x7c0] sm:$0xff]
      %v579 = vld [vmem:[%s1 + $0x7c8] sm:$0xff]
      %v580 = vld [vmem:[%s1 + $0x7d0] sm:$0xff]
      %v581 = vld [vmem:[%s1 + $0x7d8] sm:$0xff]
      %v582 = vld [vmem:[%s1 + $0x7e0] sm:$0xff]
      %v583 = vld [vmem:[%s1 + $0x7e8] sm:$0xff]
      %v584 = vld [vmem:[%s1 + $0x7f0] sm:$0xff]
      %v585 = vld [vmem:[%s1 + $0x7f8] sm:$0xff]
      %v586 = vld [vmem:[%s2] sm:$0xff]
      %v588 = vlaneseq
      %v589 = vshrl.u32 %v588, 7
      %v590 = vsub.s32 0, %v589
      %v591 = vrot.slane %v586, %v590
      %v592 = vlaneseq
      %v593 = vshrl.u32 %v592, 7
      %v594 = vsub.s32 1, %v593
      %v595 = vrot.slane %v586, %v594
      %v596 = vlaneseq
      %v597 = vshrl.u32 %v596, 7
      %v598 = vsub.s32 2, %v597
      %v599 = vrot.slane %v586, %v598
      %v600 = vlaneseq
      %v601 = vshrl.u32 %v600, 7
      %v602 = vsub.s32 3, %v601
      %v603 = vrot.slane %v586, %v602
      %v604 = vlaneseq
      %v605 = vshrl.u32 %v604, 7
      %v606 = vsub.s32 4, %v605
      %v607 = vrot.slane %v586, %v606
      %v608 = vlaneseq
      %v609 = vshrl.u32 %v608, 7
      %v610 = vsub.s32 5, %v609
      %v611 = vrot.slane %v586, %v610
      %v612 = vlaneseq
      %v613 = vshrl.u32 %v612, 7
      %v614 = vsub.s32 6, %v613
      %v615 = vrot.slane %v586, %v614
      %v616 = vlaneseq
      %v617 = vshrl.u32 %v616, 7
      %v618 = vsub.s32 7, %v617
      %v619 = vrot.slane %v586, %v618
      %628 = vmatprep.subr.mxu0 %v451
      %629 = vmatpush1.msra.mxu0 %v450
      %630 = vmatprep.subr.mxu0 %v443
      %631 = vmatpush1.msra.mxu0 %v442
      %632 = vmatprep.subr.mxu0 %v435
      %633 = vmatpush1.msra.mxu0 %v434
      %634 = vmatprep.subr.mxu0 %v427
      %635 = vmatpush1.msra.mxu0 %v426
      %636 = vmatprep.subr.mxu0 %v419
      %637 = vmatpush1.msra.mxu0 %v418
      %638 = vmatprep.subr.mxu0 %v411
      %639 = vmatpush1.msra.mxu0 %v410
      %640 = vmatprep.subr.mxu0 %v403
      %641 = vmatpush1.msra.mxu0 %v402
      %642 = vmatprep.subr.mxu0 %v395
      %643 = vmatpush1.msra.mxu0 %v394
      %644 = vmatprep.subr.mxu0 %v387
      %645 = vmatpush1.msra.mxu0 %v386
      %646 = vmatprep.subr.mxu0 %v379
      %647 = vmatpush1.msra.mxu0 %v378
      %648 = vmatprep.subr.mxu0 %v371
      %649 = vmatpush1.msra.mxu0 %v370
      %650 = vmatprep.subr.mxu0 %v363
      %651 = vmatpush1.msra.mxu0 %v362
      %652 = vmatprep.subr.mxu0 %v355
      %653 = vmatpush1.msra.mxu0 %v354
      %654 = vmatprep.subr.mxu0 %v347
      %655 = vmatpush1.msra.mxu0 %v346
      %656 = vmatprep.subr.mxu0 %v339
      %657 = vmatpush1.msra.mxu0 %v338
      %658 = vmatprep.subr.mxu0 %v331
      %659 = vmatpush1.msra.mxu0 %v330
      %660 = vmatprep.subr.mxu0 %v579
      %661 = vmatpush2.msra.mxu0 %v578
      %662 = vmatprep.subr.mxu0 %v571
      %663 = vmatpush2.msra.mxu0 %v570
      %664 = vmatprep.subr.mxu0 %v563
      %665 = vmatpush2.msra.mxu0 %v562
      %666 = vmatprep.subr.mxu0 %v555
      %667 = vmatpush2.msra.mxu0 %v554
      %668 = vmatprep.subr.mxu0 %v547
      %669 = vmatpush2.msra.mxu0 %v546
      %670 = vmatprep.subr.mxu0 %v539
      %671 = vmatpush2.msra.mxu0 %v538
      %672 = vmatprep.subr.mxu0 %v531
      %673 = vmatpush2.msra.mxu0 %v530
      %674 = vmatprep.subr.mxu0 %v523
      %675 = vmatpush2.msra.mxu0 %v522
      %676 = vmatprep.subr.mxu0 %v515
      %677 = vmatpush2.msra.mxu0 %v514
      %678 = vmatprep.subr.mxu0 %v507
      %679 = vmatpush2.msra.mxu0 %v506
      %680 = vmatprep.subr.mxu0 %v499
      %681 = vmatpush2.msra.mxu0 %v498
      %682 = vmatprep.subr.mxu0 %v491
      %683 = vmatpush2.msra.mxu0 %v490
      %684 = vmatprep.subr.mxu0 %v483
      %685 = vmatpush2.msra.mxu0 %v482
      %686 = vmatprep.subr.mxu0 %v475
      %687 = vmatpush2.msra.mxu0 %v474
      %688 = vmatprep.subr.mxu0 %v467
      %689 = vmatpush2.msra.mxu0 %v466
      %690 = vmatprep.subr.mxu0 %v459
      %691 = vmatpush2.msra.mxu0 %v458
      %692 = vmatprep.mubr.f32.mxu0 %v328
      %693 = vmatmul.mubr.f32.gmra.mxu0 %v326
      %v694 = vpop.f32.mrf.mxu0
      %v695 = vadd.f32 %v591, %v694
      %v696 = vpop.f32.mrf.mxu0
      %v697 = vadd.f32 %v595, %v696
      %698 = vdwg.mxu0
      %699 = vmatprep.subr.mxu0 %v453
      %700 = vmatpush1.msra.mxu0 %v452
      %701 = vmatprep.subr.mxu0 %v445
      %702 = vmatpush1.msra.mxu0 %v444
      %703 = vmatprep.subr.mxu0 %v437
      %704 = vmatpush1.msra.mxu0 %v436
      %705 = vmatprep.subr.mxu0 %v429
      %706 = vmatpush1.msra.mxu0 %v428
      %707 = vmatprep.subr.mxu0 %v421
      %708 = vmatpush1.msra.mxu0 %v420
      %709 = vmatprep.subr.mxu0 %v413
      %710 = vmatpush1.msra.mxu0 %v412
      %711 = vmatprep.subr.mxu0 %v405
      %712 = vmatpush1.msra.mxu0 %v404
      %713 = vmatprep.subr.mxu0 %v397
      %714 = vmatpush1.msra.mxu0 %v396
      %715 = vmatprep.subr.mxu0 %v389
      %716 = vmatpush1.msra.mxu0 %v388
      %717 = vmatprep.subr.mxu0 %v381
      %718 = vmatpush1.msra.mxu0 %v380
      %719 = vmatprep.subr.mxu0 %v373
      %720 = vmatpush1.msra.mxu0 %v372
      %721 = vmatprep.subr.mxu0 %v365
      %722 = vmatpush1.msra.mxu0 %v364
      %723 = vmatprep.subr.mxu0 %v357
      %724 = vmatpush1.msra.mxu0 %v356
      %725 = vmatprep.subr.mxu0 %v349
      %726 = vmatpush1.msra.mxu0 %v348
      %727 = vmatprep.subr.mxu0 %v341
      %728 = vmatpush1.msra.mxu0 %v340
      %729 = vmatprep.subr.mxu0 %v333
      %730 = vmatpush1.msra.mxu0 %v332
      %731 = vmatprep.subr.mxu0 %v581
      %732 = vmatpush2.msra.mxu0 %v580
      %733 = vmatprep.subr.mxu0 %v573
      %734 = vmatpush2.msra.mxu0 %v572
      %735 = vmatprep.subr.mxu0 %v565
      %736 = vmatpush2.msra.mxu0 %v564
      %737 = vmatprep.subr.mxu0 %v557
      %738 = vmatpush2.msra.mxu0 %v556
      %739 = vmatprep.subr.mxu0 %v549
      %740 = vmatpush2.msra.mxu0 %v548
      %741 = vmatprep.subr.mxu0 %v541
      %742 = vmatpush2.msra.mxu0 %v540
      %743 = vmatprep.subr.mxu0 %v533
      %744 = vmatpush2.msra.mxu0 %v532
      %745 = vmatprep.subr.mxu0 %v525
      %746 = vmatpush2.msra.mxu0 %v524
      %747 = vmatprep.subr.mxu0 %v517
      %748 = vmatpush2.msra.mxu0 %v516
      %749 = vmatprep.subr.mxu0 %v509
      %750 = vmatpush2.msra.mxu0 %v508
      %751 = vmatprep.subr.mxu0 %v501
      %752 = vmatpush2.msra.mxu0 %v500
      %753 = vmatprep.subr.mxu0 %v493
      %754 = vmatpush2.msra.mxu0 %v492
      %755 = vmatprep.subr.mxu0 %v485
      %756 = vmatpush2.msra.mxu0 %v484
      %757 = vmatprep.subr.mxu0 %v477
      %758 = vmatpush2.msra.mxu0 %v476
      %759 = vmatprep.subr.mxu0 %v469
      %760 = vmatpush2.msra.mxu0 %v468
      %761 = vmatprep.subr.mxu0 %v461
      %762 = vmatpush2.msra.mxu0 %v460
      %763 = vmatprep.mubr.f32.mxu0 %v328
      %764 = vmatmul.mubr.f32.gmra.mxu0 %v326
      %v765 = vpop.f32.mrf.mxu0
      %v766 = vadd.f32 %v599, %v765
      %v767 = vpop.f32.mrf.mxu0
      %v768 = vadd.f32 %v603, %v767
      %769 = vdwg.mxu0
      %770 = vmatprep.subr.mxu0 %v455
      %771 = vmatpush1.msra.mxu0 %v454
      %772 = vmatprep.subr.mxu0 %v447
      %773 = vmatpush1.msra.mxu0 %v446
      %774 = vmatprep.subr.mxu0 %v439
      %775 = vmatpush1.msra.mxu0 %v438
      %776 = vmatprep.subr.mxu0 %v431
      %777 = vmatpush1.msra.mxu0 %v430
      %778 = vmatprep.subr.mxu0 %v423
      %779 = vmatpush1.msra.mxu0 %v422
      %780 = vmatprep.subr.mxu0 %v415
      %781 = vmatpush1.msra.mxu0 %v414
      %782 = vmatprep.subr.mxu0 %v407
      %783 = vmatpush1.msra.mxu0 %v406
      %784 = vmatprep.subr.mxu0 %v399
      %785 = vmatpush1.msra.mxu0 %v398
      %786 = vmatprep.subr.mxu0 %v391
      %787 = vmatpush1.msra.mxu0 %v390
      %788 = vmatprep.subr.mxu0 %v383
      %789 = vmatpush1.msra.mxu0 %v382
      %790 = vmatprep.subr.mxu0 %v375
      %791 = vmatpush1.msra.mxu0 %v374
      %792 = vmatprep.subr.mxu0 %v367
      %793 = vmatpush1.msra.mxu0 %v366
      %794 = vmatprep.subr.mxu0 %v359
      %795 = vmatpush1.msra.mxu0 %v358
      %796 = vmatprep.subr.mxu0 %v351
      %797 = vmatpush1.msra.mxu0 %v350
      %798 = vmatprep.subr.mxu0 %v343
      %799 = vmatpush1.msra.mxu0 %v342
      %800 = vmatprep.subr.mxu0 %v335
      %801 = vmatpush1.msra.mxu0 %v334
      %802 = vmatprep.subr.mxu0 %v583
      %803 = vmatpush2.msra.mxu0 %v582
      %804 = vmatprep.subr.mxu0 %v575
      %805 = vmatpush2.msra.mxu0 %v574
      %806 = vmatprep.subr.mxu0 %v567
      %807 = vmatpush2.msra.mxu0 %v566
      %808 = vmatprep.subr.mxu0 %v559
      %809 = vmatpush2.msra.mxu0 %v558
      %810 = vmatprep.subr.mxu0 %v551
      %811 = vmatpush2.msra.mxu0 %v550
      %812 = vmatprep.subr.mxu0 %v543
      %813 = vmatpush2.msra.mxu0 %v542
      %814 = vmatprep.subr.mxu0 %v535
      %815 = vmatpush2.msra.mxu0 %v534
      %816 = vmatprep.subr.mxu0 %v527
      %817 = vmatpush2.msra.mxu0 %v526
      %818 = vmatprep.subr.mxu0 %v519
      %819 = vmatpush2.msra.mxu0 %v518
      %820 = vmatprep.subr.mxu0 %v511
      %821 = vmatpush2.msra.mxu0 %v510
      %822 = vmatprep.subr.mxu0 %v503
      %823 = vmatpush2.msra.mxu0 %v502
      %824 = vmatprep.subr.mxu0 %v495
      %825 = vmatpush2.msra.mxu0 %v494
      %826 = vmatprep.subr.mxu0 %v487
      %827 = vmatpush2.msra.mxu0 %v486
      %828 = vmatprep.subr.mxu0 %v479
      %829 = vmatpush2.msra.mxu0 %v478
      %830 = vmatprep.subr.mxu0 %v471
      %831 = vmatpush2.msra.mxu0 %v470
      %832 = vmatprep.subr.mxu0 %v463
      %833 = vmatpush2.msra.mxu0 %v462
      %834 = vmatprep.mubr.f32.mxu0 %v328
      %835 = vmatmul.mubr.f32.gmra.mxu0 %v326
      %v836 = vpop.f32.mrf.mxu0
      %v837 = vadd.f32 %v607, %v836
      %v838 = vpop.f32.mrf.mxu0
      %v839 = vadd.f32 %v611, %v838
      %840 = vdwg.mxu0
      %841 = vmatprep.subr.mxu0 %v457
      %842 = vmatpush1.msra.mxu0 %v456
      %843 = vmatprep.subr.mxu0 %v449
      %844 = vmatpush1.msra.mxu0 %v448
      %845 = vmatprep.subr.mxu0 %v441
      %846 = vmatpush1.msra.mxu0 %v440
      %847 = vmatprep.subr.mxu0 %v433
      %848 = vmatpush1.msra.mxu0 %v432
      %849 = vmatprep.subr.mxu0 %v425
      %850 = vmatpush1.msra.mxu0 %v424
      %851 = vmatprep.subr.mxu0 %v417
      %852 = vmatpush1.msra.mxu0 %v416
      %853 = vmatprep.subr.mxu0 %v409
      %854 = vmatpush1.msra.mxu0 %v408
      %855 = vmatprep.subr.mxu0 %v401
      %856 = vmatpush1.msra.mxu0 %v400
      %857 = vmatprep.subr.mxu0 %v393
      %858 = vmatpush1.msra.mxu0 %v392
      %859 = vmatprep.subr.mxu0 %v385
      %860 = vmatpush1.msra.mxu0 %v384
      %861 = vmatprep.subr.mxu0 %v377
      %862 = vmatpush1.msra.mxu0 %v376
      %863 = vmatprep.subr.mxu0 %v369
      %864 = vmatpush1.msra.mxu0 %v368
      %865 = vmatprep.subr.mxu0 %v361
      %866 = vmatpush1.msra.mxu0 %v360
      %867 = vmatprep.subr.mxu0 %v353
      %868 = vmatpush1.msra.mxu0 %v352
      %869 = vmatprep.subr.mxu0 %v345
      %870 = vmatpush1.msra.mxu0 %v344
      %871 = vmatprep.subr.mxu0 %v337
      %872 = vmatpush1.msra.mxu0 %v336
      %873 = vmatprep.subr.mxu0 %v585
      %874 = vmatpush2.msra.mxu0 %v584
      %875 = vmatprep.subr.mxu0 %v577
      %876 = vmatpush2.msra.mxu0 %v576
      %877 = vmatprep.subr.mxu0 %v569
      %878 = vmatpush2.msra.mxu0 %v568
      %879 = vmatprep.subr.mxu0 %v561
      %880 = vmatpush2.msra.mxu0 %v560
      %881 = vmatprep.subr.mxu0 %v553
      %882 = vmatpush2.msra.mxu0 %v552
      %883 = vmatprep.subr.mxu0 %v545
      %884 = vmatpush2.msra.mxu0 %v544
      %885 = vmatprep.subr.mxu0 %v537
      %886 = vmatpush2.msra.mxu0 %v536
      %887 = vmatprep.subr.mxu0 %v529
      %888 = vmatpush2.msra.mxu0 %v528
      %889 = vmatprep.subr.mxu0 %v521
      %890 = vmatpush2.msra.mxu0 %v520
      %891 = vmatprep.subr.mxu0 %v513
      %892 = vmatpush2.msra.mxu0 %v512
      %893 = vmatprep.subr.mxu0 %v505
      %894 = vmatpush2.msra.mxu0 %v504
      %895 = vmatprep.subr.mxu0 %v497
      %896 = vmatpush2.msra.mxu0 %v496
      %897 = vmatprep.subr.mxu0 %v489
      %898 = vmatpush2.msra.mxu0 %v488
      %899 = vmatprep.subr.mxu0 %v481
      %900 = vmatpush2.msra.mxu0 %v480
      %901 = vmatprep.subr.mxu0 %v473
      %902 = vmatpush2.msra.mxu0 %v472
      %903 = vmatprep.subr.mxu0 %v465
      %904 = vmatpush2.msra.mxu0 %v464
      %905 = vmatprep.mubr.f32.mxu0 %v328
      %906 = vmatmul.mubr.f32.gmra.mxu0 %v326
      %v907 = vpop.f32.mrf.mxu0
      %v908 = vadd.f32 %v615, %v907
      %v909 = vpop.f32.mrf.mxu0
      %v910 = vadd.f32 %v619, %v909
      %911 = vdwg.mxu0
      %v912 = vmax.f32 %v695, %v766
      %v913 = vmax.f32 %v697, %v768
      %v914 = vmax.f32 %v837, %v908
      %v915 = vmax.f32 %v839, %v910
      %v916 = vmax.f32 %v912, %v914
      %v917 = vmax.f32 %v913, %v915
      %v918 = vmax.f32 %v916, 0.0
      %v919 = vmax.f32 %v917, 0.0
      %v922 = vrot.slane %v918, 1
      %v923 = vrot.slane %v919, 1
      %v926 = vrot.slane %v918, 2
      %v927 = vrot.slane %v919, 2
      %v930 = vld [vmem:[%s3] sm:$0xff]
      %v931 = vld [vmem:[%s3 + $0x8] sm:$0xff]
      %v932 = vld [vmem:[%s3 + $0x10] sm:$0xff]
      %v933 = vld [vmem:[%s3 + $0x18] sm:$0xff]
      %v934 = vld [vmem:[%s3 + $0x20] sm:$0xff]
      %v935 = vld [vmem:[%s3 + $0x28] sm:$0xff]
      %v936 = vld [vmem:[%s3 + $0x30] sm:$0xff]
      %v937 = vld [vmem:[%s3 + $0x38] sm:$0xff]
      %v938 = vld [vmem:[%s3 + $0x40] sm:$0xff]
      %v939 = vld [vmem:[%s3 + $0x48] sm:$0xff]
      %v940 = vld [vmem:[%s3 + $0x50] sm:$0xff]
      %v941 = vld [vmem:[%s3 + $0x58] sm:$0xff]
      %v942 = vld [vmem:[%s3 + $0x60] sm:$0xff]
      %v943 = vld [vmem:[%s3 + $0x68] sm:$0xff]
      %v944 = vld [vmem:[%s3 + $0x70] sm:$0xff]
      %v945 = vld [vmem:[%s3 + $0x78] sm:$0xff]
      %v946 = vld [vmem:[%s3 + $0x80] sm:$0xff]
      %v947 = vld [vmem:[%s3 + $0x88] sm:$0xff]
      %v948 = vld [vmem:[%s3 + $0x90] sm:$0xff]
      %v949 = vld [vmem:[%s3 + $0x98] sm:$0xff]
      %v950 = vld [vmem:[%s3 + $0xa0] sm:$0xff]
      %v951 = vld [vmem:[%s3 + $0xa8] sm:$0xff]
      %v952 = vld [vmem:[%s3 + $0xb0] sm:$0xff]
      %v953 = vld [vmem:[%s3 + $0xb8] sm:$0xff]
      %v954 = vld [vmem:[%s3 + $0xc0] sm:$0xff]
      %v955 = vld [vmem:[%s3 + $0xc8] sm:$0xff]
      %v956 = vld [vmem:[%s3 + $0xd0] sm:$0xff]
      %v957 = vld [vmem:[%s3 + $0xd8] sm:$0xff]
      %v958 = vld [vmem:[%s3 + $0xe0] sm:$0xff]
      %v959 = vld [vmem:[%s3 + $0xe8] sm:$0xff]
      %v960 = vld [vmem:[%s3 + $0xf0] sm:$0xff]
      %v961 = vld [vmem:[%s3 + $0xf8] sm:$0xff]
      %v962 = vld [vmem:[%s3 + $0x100] sm:$0xff]
      %v963 = vld [vmem:[%s3 + $0x108] sm:$0xff]
      %v964 = vld [vmem:[%s3 + $0x110] sm:$0xff]
      %v965 = vld [vmem:[%s3 + $0x118] sm:$0xff]
      %v966 = vld [vmem:[%s3 + $0x120] sm:$0xff]
      %v967 = vld [vmem:[%s3 + $0x128] sm:$0xff]
      %v968 = vld [vmem:[%s3 + $0x130] sm:$0xff]
      %v969 = vld [vmem:[%s3 + $0x138] sm:$0xff]
      %v970 = vld [vmem:[%s3 + $0x140] sm:$0xff]
      %v971 = vld [vmem:[%s3 + $0x148] sm:$0xff]
      %v972 = vld [vmem:[%s3 + $0x150] sm:$0xff]
      %v973 = vld [vmem:[%s3 + $0x158] sm:$0xff]
      %v974 = vld [vmem:[%s3 + $0x160] sm:$0xff]
      %v975 = vld [vmem:[%s3 + $0x168] sm:$0xff]
      %v976 = vld [vmem:[%s3 + $0x170] sm:$0xff]
      %v977 = vld [vmem:[%s3 + $0x178] sm:$0xff]
      %v978 = vld [vmem:[%s3 + $0x180] sm:$0xff]
      %v979 = vld [vmem:[%s3 + $0x188] sm:$0xff]
      %v980 = vld [vmem:[%s3 + $0x190] sm:$0xff]
      %v981 = vld [vmem:[%s3 + $0x198] sm:$0xff]
      %v982 = vld [vmem:[%s3 + $0x1a0] sm:$0xff]
      %v983 = vld [vmem:[%s3 + $0x1a8] sm:$0xff]
      %v984 = vld [vmem:[%s3 + $0x1b0] sm:$0xff]
      %v985 = vld [vmem:[%s3 + $0x1b8] sm:$0xff]
      %v986 = vld [vmem:[%s3 + $0x1c0] sm:$0xff]
      %v987 = vld [vmem:[%s3 + $0x1c8] sm:$0xff]
      %v988 = vld [vmem:[%s3 + $0x1d0] sm:$0xff]
      %v989 = vld [vmem:[%s3 + $0x1d8] sm:$0xff]
      %v990 = vld [vmem:[%s3 + $0x1e0] sm:$0xff]
      %v991 = vld [vmem:[%s3 + $0x1e8] sm:$0xff]
      %v992 = vld [vmem:[%s3 + $0x1f0] sm:$0xff]
      %v993 = vld [vmem:[%s3 + $0x1f8] sm:$0xff]
      %v994 = vld [vmem:[%s3 + $0x200] sm:$0xff]
      %v995 = vld [vmem:[%s3 + $0x208] sm:$0xff]
      %v996 = vld [vmem:[%s3 + $0x210] sm:$0xff]
      %v997 = vld [vmem:[%s3 + $0x218] sm:$0xff]
      %v998 = vld [vmem:[%s3 + $0x220] sm:$0xff]
      %v999 = vld [vmem:[%s3 + $0x228] sm:$0xff]
      %v1000 = vld [vmem:[%s3 + $0x230] sm:$0xff]
      %v1001 = vld [vmem:[%s3 + $0x238] sm:$0xff]
      %v1002 = vld [vmem:[%s3 + $0x240] sm:$0xff]
      %v1003 = vld [vmem:[%s3 + $0x248] sm:$0xff]
      %v1004 = vld [vmem:[%s3 + $0x250] sm:$0xff]
      %v1005 = vld [vmem:[%s3 + $0x258] sm:$0xff]
      %v1006 = vld [vmem:[%s3 + $0x260] sm:$0xff]
      %v1007 = vld [vmem:[%s3 + $0x268] sm:$0xff]
      %v1008 = vld [vmem:[%s3 + $0x270] sm:$0xff]
      %v1009 = vld [vmem:[%s3 + $0x278] sm:$0xff]
      %v1010 = vld [vmem:[%s3 + $0x280] sm:$0xff]
      %v1011 = vld [vmem:[%s3 + $0x288] sm:$0xff]
      %v1012 = vld [vmem:[%s3 + $0x290] sm:$0xff]
      %v1013 = vld [vmem:[%s3 + $0x298] sm:$0xff]
      %v1014 = vld [vmem:[%s3 + $0x2a0] sm:$0xff]
      %v1015 = vld [vmem:[%s3 + $0x2a8] sm:$0xff]
      %v1016 = vld [vmem:[%s3 + $0x2b0] sm:$0xff]
      %v1017 = vld [vmem:[%s3 + $0x2b8] sm:$0xff]
      %v1018 = vld [vmem:[%s3 + $0x2c0] sm:$0xff]
      %v1019 = vld [vmem:[%s3 + $0x2c8] sm:$0xff]
      %v1020 = vld [vmem:[%s3 + $0x2d0] sm:$0xff]
      %v1021 = vld [vmem:[%s3 + $0x2d8] sm:$0xff]
      %v1022 = vld [vmem:[%s3 + $0x2e0] sm:$0xff]
      %v1023 = vld [vmem:[%s3 + $0x2e8] sm:$0xff]
      %v1024 = vld [vmem:[%s3 + $0x2f0] sm:$0xff]
      %v1025 = vld [vmem:[%s3 + $0x2f8] sm:$0xff]
      %v1026 = vld [vmem:[%s3 + $0x300] sm:$0xff]
      %v1027 = vld [vmem:[%s3 + $0x308] sm:$0xff]
      %v1028 = vld [vmem:[%s3 + $0x310] sm:$0xff]
      %v1029 = vld [vmem:[%s3 + $0x318] sm:$0xff]
      %v1030 = vld [vmem:[%s3 + $0x320] sm:$0xff]
      %v1031 = vld [vmem:[%s3 + $0x328] sm:$0xff]
      %v1032 = vld [vmem:[%s3 + $0x330] sm:$0xff]
      %v1033 = vld [vmem:[%s3 + $0x338] sm:$0xff]
      %v1034 = vld [vmem:[%s3 + $0x340] sm:$0xff]
      %v1035 = vld [vmem:[%s3 + $0x348] sm:$0xff]
      %v1036 = vld [vmem:[%s3 + $0x350] sm:$0xff]
      %v1037 = vld [vmem:[%s3 + $0x358] sm:$0xff]
      %v1038 = vld [vmem:[%s3 + $0x360] sm:$0xff]
      %v1039 = vld [vmem:[%s3 + $0x368] sm:$0xff]
      %v1040 = vld [vmem:[%s3 + $0x370] sm:$0xff]
      %v1041 = vld [vmem:[%s3 + $0x378] sm:$0xff]
      %v1042 = vld [vmem:[%s3 + $0x380] sm:$0xff]
      %v1043 = vld [vmem:[%s3 + $0x388] sm:$0xff]
      %v1044 = vld [vmem:[%s3 + $0x390] sm:$0xff]
      %v1045 = vld [vmem:[%s3 + $0x398] sm:$0xff]
      %v1046 = vld [vmem:[%s3 + $0x3a0] sm:$0xff]
      %v1047 = vld [vmem:[%s3 + $0x3a8] sm:$0xff]
      %v1048 = vld [vmem:[%s3 + $0x3b0] sm:$0xff]
      %v1049 = vld [vmem:[%s3 + $0x3b8] sm:$0xff]
      %v1050 = vld [vmem:[%s3 + $0x3c0] sm:$0xff]
      %v1051 = vld [vmem:[%s3 + $0x3c8] sm:$0xff]
      %v1052 = vld [vmem:[%s3 + $0x3d0] sm:$0xff]
      %v1053 = vld [vmem:[%s3 + $0x3d8] sm:$0xff]
      %v1054 = vld [vmem:[%s3 + $0x3e0] sm:$0xff]
      %v1055 = vld [vmem:[%s3 + $0x3e8] sm:$0xff]
      %v1056 = vld [vmem:[%s3 + $0x3f0] sm:$0xff]
      %v1057 = vld [vmem:[%s3 + $0x3f8] sm:$0xff]
      %v1058 = vld [vmem:[%s3 + $0x400] sm:$0xff]
      %v1059 = vld [vmem:[%s3 + $0x408] sm:$0xff]
      %v1060 = vld [vmem:[%s3 + $0x410] sm:$0xff]
      %v1061 = vld [vmem:[%s3 + $0x418] sm:$0xff]
      %v1062 = vld [vmem:[%s3 + $0x420] sm:$0xff]
      %v1063 = vld [vmem:[%s3 + $0x428] sm:$0xff]
      %v1064 = vld [vmem:[%s3 + $0x430] sm:$0xff]
      %v1065 = vld [vmem:[%s3 + $0x438] sm:$0xff]
      %v1066 = vld [vmem:[%s3 + $0x440] sm:$0xff]
      %v1067 = vld [vmem:[%s3 + $0x448] sm:$0xff]
      %v1068 = vld [vmem:[%s3 + $0x450] sm:$0xff]
      %v1069 = vld [vmem:[%s3 + $0x458] sm:$0xff]
      %v1070 = vld [vmem:[%s3 + $0x460] sm:$0xff]
      %v1071 = vld [vmem:[%s3 + $0x468] sm:$0xff]
      %v1072 = vld [vmem:[%s3 + $0x470] sm:$0xff]
      %v1073 = vld [vmem:[%s3 + $0x478] sm:$0xff]
      %v1074 = vld [vmem:[%s3 + $0x480] sm:$0xff]
      %v1075 = vld [vmem:[%s3 + $0x488] sm:$0xff]
      %v1076 = vld [vmem:[%s3 + $0x490] sm:$0xff]
      %v1077 = vld [vmem:[%s3 + $0x498] sm:$0xff]
      %v1078 = vld [vmem:[%s3 + $0x4a0] sm:$0xff]
      %v1079 = vld [vmem:[%s3 + $0x4a8] sm:$0xff]
      %v1080 = vld [vmem:[%s3 + $0x4b0] sm:$0xff]
      %v1081 = vld [vmem:[%s3 + $0x4b8] sm:$0xff]
      %v1082 = vld [vmem:[%s3 + $0x4c0] sm:$0xff]
      %v1083 = vld [vmem:[%s3 + $0x4c8] sm:$0xff]
      %v1084 = vld [vmem:[%s3 + $0x4d0] sm:$0xff]
      %v1085 = vld [vmem:[%s3 + $0x4d8] sm:$0xff]
      %v1086 = vld [vmem:[%s3 + $0x4e0] sm:$0xff]
      %v1087 = vld [vmem:[%s3 + $0x4e8] sm:$0xff]
      %v1088 = vld [vmem:[%s3 + $0x4f0] sm:$0xff]
      %v1089 = vld [vmem:[%s3 + $0x4f8] sm:$0xff]
      %v1090 = vld [vmem:[%s3 + $0x500] sm:$0xff]
      %v1091 = vld [vmem:[%s3 + $0x508] sm:$0xff]
      %v1092 = vld [vmem:[%s3 + $0x510] sm:$0xff]
      %v1093 = vld [vmem:[%s3 + $0x518] sm:$0xff]
      %v1094 = vld [vmem:[%s3 + $0x520] sm:$0xff]
      %v1095 = vld [vmem:[%s3 + $0x528] sm:$0xff]
      %v1096 = vld [vmem:[%s3 + $0x530] sm:$0xff]
      %v1097 = vld [vmem:[%s3 + $0x538] sm:$0xff]
      %v1098 = vld [vmem:[%s3 + $0x540] sm:$0xff]
      %v1099 = vld [vmem:[%s3 + $0x548] sm:$0xff]
      %v1100 = vld [vmem:[%s3 + $0x550] sm:$0xff]
      %v1101 = vld [vmem:[%s3 + $0x558] sm:$0xff]
      %v1102 = vld [vmem:[%s3 + $0x560] sm:$0xff]
      %v1103 = vld [vmem:[%s3 + $0x568] sm:$0xff]
      %v1104 = vld [vmem:[%s3 + $0x570] sm:$0xff]
      %v1105 = vld [vmem:[%s3 + $0x578] sm:$0xff]
      %v1106 = vld [vmem:[%s3 + $0x580] sm:$0xff]
      %v1107 = vld [vmem:[%s3 + $0x588] sm:$0xff]
      %v1108 = vld [vmem:[%s3 + $0x590] sm:$0xff]
      %v1109 = vld [vmem:[%s3 + $0x598] sm:$0xff]
      %v1110 = vld [vmem:[%s3 + $0x5a0] sm:$0xff]
      %v1111 = vld [vmem:[%s3 + $0x5a8] sm:$0xff]
      %v1112 = vld [vmem:[%s3 + $0x5b0] sm:$0xff]
      %v1113 = vld [vmem:[%s3 + $0x5b8] sm:$0xff]
      %v1114 = vld [vmem:[%s3 + $0x5c0] sm:$0xff]
      %v1115 = vld [vmem:[%s3 + $0x5c8] sm:$0xff]
      %v1116 = vld [vmem:[%s3 + $0x5d0] sm:$0xff]
      %v1117 = vld [vmem:[%s3 + $0x5d8] sm:$0xff]
      %v1118 = vld [vmem:[%s3 + $0x5e0] sm:$0xff]
      %v1119 = vld [vmem:[%s3 + $0x5e8] sm:$0xff]
      %v1120 = vld [vmem:[%s3 + $0x5f0] sm:$0xff]
      %v1121 = vld [vmem:[%s3 + $0x5f8] sm:$0xff]
      %v1122 = vld [vmem:[%s3 + $0x600] sm:$0xff]
      %v1123 = vld [vmem:[%s3 + $0x608] sm:$0xff]
      %v1124 = vld [vmem:[%s3 + $0x610] sm:$0xff]
      %v1125 = vld [vmem:[%s3 + $0x618] sm:$0xff]
      %v1126 = vld [vmem:[%s3 + $0x620] sm:$0xff]
      %v1127 = vld [vmem:[%s3 + $0x628] sm:$0xff]
      %v1128 = vld [vmem:[%s3 + $0x630] sm:$0xff]
      %v1129 = vld [vmem:[%s3 + $0x638] sm:$0xff]
      %v1130 = vld [vmem:[%s3 + $0x640] sm:$0xff]
      %v1131 = vld [vmem:[%s3 + $0x648] sm:$0xff]
      %v1132 = vld [vmem:[%s3 + $0x650] sm:$0xff]
      %v1133 = vld [vmem:[%s3 + $0x658] sm:$0xff]
      %v1134 = vld [vmem:[%s3 + $0x660] sm:$0xff]
      %v1135 = vld [vmem:[%s3 + $0x668] sm:$0xff]
      %v1136 = vld [vmem:[%s3 + $0x670] sm:$0xff]
      %v1137 = vld [vmem:[%s3 + $0x678] sm:$0xff]
      %v1138 = vld [vmem:[%s3 + $0x680] sm:$0xff]
      %v1139 = vld [vmem:[%s3 + $0x688] sm:$0xff]
      %v1140 = vld [vmem:[%s3 + $0x690] sm:$0xff]
      %v1141 = vld [vmem:[%s3 + $0x698] sm:$0xff]
      %v1142 = vld [vmem:[%s3 + $0x6a0] sm:$0xff]
      %v1143 = vld [vmem:[%s3 + $0x6a8] sm:$0xff]
      %v1144 = vld [vmem:[%s3 + $0x6b0] sm:$0xff]
      %v1145 = vld [vmem:[%s3 + $0x6b8] sm:$0xff]
      %v1146 = vld [vmem:[%s3 + $0x6c0] sm:$0xff]
      %v1147 = vld [vmem:[%s3 + $0x6c8] sm:$0xff]
      %v1148 = vld [vmem:[%s3 + $0x6d0] sm:$0xff]
      %v1149 = vld [vmem:[%s3 + $0x6d8] sm:$0xff]
      %v1150 = vld [vmem:[%s3 + $0x6e0] sm:$0xff]
      %v1151 = vld [vmem:[%s3 + $0x6e8] sm:$0xff]
      %v1152 = vld [vmem:[%s3 + $0x6f0] sm:$0xff]
      %v1153 = vld [vmem:[%s3 + $0x6f8] sm:$0xff]
      %v1154 = vld [vmem:[%s3 + $0x700] sm:$0xff]
      %v1155 = vld [vmem:[%s3 + $0x708] sm:$0xff]
      %v1156 = vld [vmem:[%s3 + $0x710] sm:$0xff]
      %v1157 = vld [vmem:[%s3 + $0x718] sm:$0xff]
      %v1158 = vld [vmem:[%s3 + $0x720] sm:$0xff]
      %v1159 = vld [vmem:[%s3 + $0x728] sm:$0xff]
      %v1160 = vld [vmem:[%s3 + $0x730] sm:$0xff]
      %v1161 = vld [vmem:[%s3 + $0x738] sm:$0xff]
      %v1162 = vld [vmem:[%s3 + $0x740] sm:$0xff]
      %v1163 = vld [vmem:[%s3 + $0x748] sm:$0xff]
      %v1164 = vld [vmem:[%s3 + $0x750] sm:$0xff]
      %v1165 = vld [vmem:[%s3 + $0x758] sm:$0xff]
      %v1166 = vld [vmem:[%s3 + $0x760] sm:$0xff]
      %v1167 = vld [vmem:[%s3 + $0x768] sm:$0xff]
      %v1168 = vld [vmem:[%s3 + $0x770] sm:$0xff]
      %v1169 = vld [vmem:[%s3 + $0x778] sm:$0xff]
      %v1170 = vld [vmem:[%s3 + $0x780] sm:$0xff]
      %v1171 = vld [vmem:[%s3 + $0x788] sm:$0xff]
      %v1172 = vld [vmem:[%s3 + $0x790] sm:$0xff]
      %v1173 = vld [vmem:[%s3 + $0x798] sm:$0xff]
      %v1174 = vld [vmem:[%s3 + $0x7a0] sm:$0xff]
      %v1175 = vld [vmem:[%s3 + $0x7a8] sm:$0xff]
      %v1176 = vld [vmem:[%s3 + $0x7b0] sm:$0xff]
      %v1177 = vld [vmem:[%s3 + $0x7b8] sm:$0xff]
      %v1178 = vld [vmem:[%s3 + $0x7c0] sm:$0xff]
      %v1179 = vld [vmem:[%s3 + $0x7c8] sm:$0xff]
      %v1180 = vld [vmem:[%s3 + $0x7d0] sm:$0xff]
      %v1181 = vld [vmem:[%s3 + $0x7d8] sm:$0xff]
      %v1182 = vld [vmem:[%s3 + $0x7e0] sm:$0xff]
      %v1183 = vld [vmem:[%s3 + $0x7e8] sm:$0xff]
      %v1184 = vld [vmem:[%s3 + $0x7f0] sm:$0xff]
      %v1185 = vld [vmem:[%s3 + $0x7f8] sm:$0xff]
      %v1186 = vld [vmem:[%s3 + $0x800] sm:$0xff]
      %v1187 = vld [vmem:[%s3 + $0x808] sm:$0xff]
      %v1188 = vld [vmem:[%s3 + $0x810] sm:$0xff]
      %v1189 = vld [vmem:[%s3 + $0x818] sm:$0xff]
      %v1190 = vld [vmem:[%s3 + $0x820] sm:$0xff]
      %v1191 = vld [vmem:[%s3 + $0x828] sm:$0xff]
      %v1192 = vld [vmem:[%s3 + $0x830] sm:$0xff]
      %v1193 = vld [vmem:[%s3 + $0x838] sm:$0xff]
      %v1194 = vld [vmem:[%s3 + $0x840] sm:$0xff]
      %v1195 = vld [vmem:[%s3 + $0x848] sm:$0xff]
      %v1196 = vld [vmem:[%s3 + $0x850] sm:$0xff]
      %v1197 = vld [vmem:[%s3 + $0x858] sm:$0xff]
      %v1198 = vld [vmem:[%s3 + $0x860] sm:$0xff]
      %v1199 = vld [vmem:[%s3 + $0x868] sm:$0xff]
      %v1200 = vld [vmem:[%s3 + $0x870] sm:$0xff]
      %v1201 = vld [vmem:[%s3 + $0x878] sm:$0xff]
      %v1202 = vld [vmem:[%s3 + $0x880] sm:$0xff]
      %v1203 = vld [vmem:[%s3 + $0x888] sm:$0xff]
      %v1204 = vld [vmem:[%s3 + $0x890] sm:$0xff]
      %v1205 = vld [vmem:[%s3 + $0x898] sm:$0xff]
      %v1206 = vld [vmem:[%s3 + $0x8a0] sm:$0xff]
      %v1207 = vld [vmem:[%s3 + $0x8a8] sm:$0xff]
      %v1208 = vld [vmem:[%s3 + $0x8b0] sm:$0xff]
      %v1209 = vld [vmem:[%s3 + $0x8b8] sm:$0xff]
      %v1210 = vld [vmem:[%s3 + $0x8c0] sm:$0xff]
      %v1211 = vld [vmem:[%s3 + $0x8c8] sm:$0xff]
      %v1212 = vld [vmem:[%s3 + $0x8d0] sm:$0xff]
      %v1213 = vld [vmem:[%s3 + $0x8d8] sm:$0xff]
      %v1214 = vld [vmem:[%s3 + $0x8e0] sm:$0xff]
      %v1215 = vld [vmem:[%s3 + $0x8e8] sm:$0xff]
      %v1216 = vld [vmem:[%s3 + $0x8f0] sm:$0xff]
      %v1217 = vld [vmem:[%s3 + $0x8f8] sm:$0xff]
      %v1218 = vld [vmem:[%s3 + $0x900] sm:$0xff]
      %v1219 = vld [vmem:[%s3 + $0x908] sm:$0xff]
      %v1220 = vld [vmem:[%s3 + $0x910] sm:$0xff]
      %v1221 = vld [vmem:[%s3 + $0x918] sm:$0xff]
      %v1222 = vld [vmem:[%s3 + $0x920] sm:$0xff]
      %v1223 = vld [vmem:[%s3 + $0x928] sm:$0xff]
      %v1224 = vld [vmem:[%s3 + $0x930] sm:$0xff]
      %v1225 = vld [vmem:[%s3 + $0x938] sm:$0xff]
      %v1226 = vld [vmem:[%s3 + $0x940] sm:$0xff]
      %v1227 = vld [vmem:[%s3 + $0x948] sm:$0xff]
      %v1228 = vld [vmem:[%s3 + $0x950] sm:$0xff]
      %v1229 = vld [vmem:[%s3 + $0x958] sm:$0xff]
      %v1230 = vld [vmem:[%s3 + $0x960] sm:$0xff]
      %v1231 = vld [vmem:[%s3 + $0x968] sm:$0xff]
      %v1232 = vld [vmem:[%s3 + $0x970] sm:$0xff]
      %v1233 = vld [vmem:[%s3 + $0x978] sm:$0xff]
      %v1234 = vld [vmem:[%s3 + $0x980] sm:$0xff]
      %v1235 = vld [vmem:[%s3 + $0x988] sm:$0xff]
      %v1236 = vld [vmem:[%s3 + $0x990] sm:$0xff]
      %v1237 = vld [vmem:[%s3 + $0x998] sm:$0xff]
      %v1238 = vld [vmem:[%s3 + $0x9a0] sm:$0xff]
      %v1239 = vld [vmem:[%s3 + $0x9a8] sm:$0xff]
      %v1240 = vld [vmem:[%s3 + $0x9b0] sm:$0xff]
      %v1241 = vld [vmem:[%s3 + $0x9b8] sm:$0xff]
      %v1242 = vld [vmem:[%s3 + $0x9c0] sm:$0xff]
      %v1243 = vld [vmem:[%s3 + $0x9c8] sm:$0xff]
      %v1244 = vld [vmem:[%s3 + $0x9d0] sm:$0xff]
      %v1245 = vld [vmem:[%s3 + $0x9d8] sm:$0xff]
      %v1246 = vld [vmem:[%s3 + $0x9e0] sm:$0xff]
      %v1247 = vld [vmem:[%s3 + $0x9e8] sm:$0xff]
      %v1248 = vld [vmem:[%s3 + $0x9f0] sm:$0xff]
      %v1249 = vld [vmem:[%s3 + $0x9f8] sm:$0xff]
      %v1250 = vld [vmem:[%s3 + $0xa00] sm:$0xff]
      %v1251 = vld [vmem:[%s3 + $0xa08] sm:$0xff]
      %v1252 = vld [vmem:[%s3 + $0xa10] sm:$0xff]
      %v1253 = vld [vmem:[%s3 + $0xa18] sm:$0xff]
      %v1254 = vld [vmem:[%s3 + $0xa20] sm:$0xff]
      %v1255 = vld [vmem:[%s3 + $0xa28] sm:$0xff]
      %v1256 = vld [vmem:[%s3 + $0xa30] sm:$0xff]
      %v1257 = vld [vmem:[%s3 + $0xa38] sm:$0xff]
      %v1258 = vld [vmem:[%s3 + $0xa40] sm:$0xff]
      %v1259 = vld [vmem:[%s3 + $0xa48] sm:$0xff]
      %v1260 = vld [vmem:[%s3 + $0xa50] sm:$0xff]
      %v1261 = vld [vmem:[%s3 + $0xa58] sm:$0xff]
      %v1262 = vld [vmem:[%s3 + $0xa60] sm:$0xff]
      %v1263 = vld [vmem:[%s3 + $0xa68] sm:$0xff]
      %v1264 = vld [vmem:[%s3 + $0xa70] sm:$0xff]
      %v1265 = vld [vmem:[%s3 + $0xa78] sm:$0xff]
      %v1266 = vld [vmem:[%s3 + $0xa80] sm:$0xff]
      %v1267 = vld [vmem:[%s3 + $0xa88] sm:$0xff]
      %v1268 = vld [vmem:[%s3 + $0xa90] sm:$0xff]
      %v1269 = vld [vmem:[%s3 + $0xa98] sm:$0xff]
      %v1270 = vld [vmem:[%s3 + $0xaa0] sm:$0xff]
      %v1271 = vld [vmem:[%s3 + $0xaa8] sm:$0xff]
      %v1272 = vld [vmem:[%s3 + $0xab0] sm:$0xff]
      %v1273 = vld [vmem:[%s3 + $0xab8] sm:$0xff]
      %v1274 = vld [vmem:[%s3 + $0xac0] sm:$0xff]
      %v1275 = vld [vmem:[%s3 + $0xac8] sm:$0xff]
      %v1276 = vld [vmem:[%s3 + $0xad0] sm:$0xff]
      %v1277 = vld [vmem:[%s3 + $0xad8] sm:$0xff]
      %v1278 = vld [vmem:[%s3 + $0xae0] sm:$0xff]
      %v1279 = vld [vmem:[%s3 + $0xae8] sm:$0xff]
      %v1280 = vld [vmem:[%s3 + $0xaf0] sm:$0xff]
      %v1281 = vld [vmem:[%s3 + $0xaf8] sm:$0xff]
      %v1282 = vld [vmem:[%s3 + $0xb00] sm:$0xff]
      %v1283 = vld [vmem:[%s3 + $0xb08] sm:$0xff]
      %v1284 = vld [vmem:[%s3 + $0xb10] sm:$0xff]
      %v1285 = vld [vmem:[%s3 + $0xb18] sm:$0xff]
      %v1286 = vld [vmem:[%s3 + $0xb20] sm:$0xff]
      %v1287 = vld [vmem:[%s3 + $0xb28] sm:$0xff]
      %v1288 = vld [vmem:[%s3 + $0xb30] sm:$0xff]
      %v1289 = vld [vmem:[%s3 + $0xb38] sm:$0xff]
      %v1290 = vld [vmem:[%s3 + $0xb40] sm:$0xff]
      %v1291 = vld [vmem:[%s3 + $0xb48] sm:$0xff]
      %v1292 = vld [vmem:[%s3 + $0xb50] sm:$0xff]
      %v1293 = vld [vmem:[%s3 + $0xb58] sm:$0xff]
      %v1294 = vld [vmem:[%s3 + $0xb60] sm:$0xff]
      %v1295 = vld [vmem:[%s3 + $0xb68] sm:$0xff]
      %v1296 = vld [vmem:[%s3 + $0xb70] sm:$0xff]
      %v1297 = vld [vmem:[%s3 + $0xb78] sm:$0xff]
      %v1298 = vld [vmem:[%s3 + $0xb80] sm:$0xff]
      %v1299 = vld [vmem:[%s3 + $0xb88] sm:$0xff]
      %v1300 = vld [vmem:[%s3 + $0xb90] sm:$0xff]
      %v1301 = vld [vmem:[%s3 + $0xb98] sm:$0xff]
      %v1302 = vld [vmem:[%s3 + $0xba0] sm:$0xff]
      %v1303 = vld [vmem:[%s3 + $0xba8] sm:$0xff]
      %v1304 = vld [vmem:[%s3 + $0xbb0] sm:$0xff]
      %v1305 = vld [vmem:[%s3 + $0xbb8] sm:$0xff]
      %v1306 = vld [vmem:[%s3 + $0xbc0] sm:$0xff]
      %v1307 = vld [vmem:[%s3 + $0xbc8] sm:$0xff]
      %v1308 = vld [vmem:[%s3 + $0xbd0] sm:$0xff]
      %v1309 = vld [vmem:[%s3 + $0xbd8] sm:$0xff]
      %v1310 = vld [vmem:[%s3 + $0xbe0] sm:$0xff]
      %v1311 = vld [vmem:[%s3 + $0xbe8] sm:$0xff]
      %v1312 = vld [vmem:[%s3 + $0xbf0] sm:$0xff]
      %v1313 = vld [vmem:[%s3 + $0xbf8] sm:$0xff]
      %v1314 = vld [vmem:[%s4] sm:$0xf]
      %v1316 = vlaneseq
      %v1317 = vshrl.u32 %v1316, 7
      %v1318 = vsub.s32 0, %v1317
      %v1319 = vrot.slane %v1314, %v1318
      %v1320 = vlaneseq
      %v1321 = vshrl.u32 %v1320, 7
      %v1322 = vsub.s32 1, %v1321
      %v1323 = vrot.slane %v1314, %v1322
      %v1324 = vlaneseq
      %v1325 = vshrl.u32 %v1324, 7
      %v1326 = vsub.s32 2, %v1325
      %v1327 = vrot.slane %v1314, %v1326
      %v1328 = vlaneseq
      %v1329 = vshrl.u32 %v1328, 7
      %v1330 = vsub.s32 3, %v1329
      %v1331 = vrot.slane %v1314, %v1330
      %1336 = vmatprep.subr.mxu0 %v991
      %1337 = vmatpush1.msra.mxu0 %v990
      %1338 = vmatprep.subr.mxu0 %v987
      %1339 = vmatpush1.msra.mxu0 %v986
      %1340 = vmatprep.subr.mxu0 %v983
      %1341 = vmatpush1.msra.mxu0 %v982
      %1342 = vmatprep.subr.mxu0 %v979
      %1343 = vmatpush1.msra.mxu0 %v978
      %1344 = vmatprep.subr.mxu0 %v975
      %1345 = vmatpush1.msra.mxu0 %v974
      %1346 = vmatprep.subr.mxu0 %v971
      %1347 = vmatpush1.msra.mxu0 %v970
      %1348 = vmatprep.subr.mxu0 %v967
      %1349 = vmatpush1.msra.mxu0 %v966
      %1350 = vmatprep.subr.mxu0 %v963
      %1351 = vmatpush1.msra.mxu0 %v962
      %1352 = vmatprep.subr.mxu0 %v959
      %1353 = vmatpush1.msra.mxu0 %v958
      %1354 = vmatprep.subr.mxu0 %v955
      %1355 = vmatpush1.msra.mxu0 %v954
      %1356 = vmatprep.subr.mxu0 %v951
      %1357 = vmatpush1.msra.mxu0 %v950
      %1358 = vmatprep.subr.mxu0 %v947
      %1359 = vmatpush1.msra.mxu0 %v946
      %1360 = vmatprep.subr.mxu0 %v943
      %1361 = vmatpush1.msra.mxu0 %v942
      %1362 = vmatprep.subr.mxu0 %v939
      %1363 = vmatpush1.msra.mxu0 %v938
      %1364 = vmatprep.subr.mxu0 %v935
      %1365 = vmatpush1.msra.mxu0 %v934
      %1366 = vmatprep.subr.mxu0 %v931
      %1367 = vmatpush1.msra.mxu0 %v930
      %1368 = vmatprep.subr.mxu0 %v1055
      %1369 = vmatpush2.msra.mxu0 %v1054
      %1370 = vmatprep.subr.mxu0 %v1051
      %1371 = vmatpush2.msra.mxu0 %v1050
      %1372 = vmatprep.subr.mxu0 %v1047
      %1373 = vmatpush2.msra.mxu0 %v1046
      %1374 = vmatprep.subr.mxu0 %v1043
      %1375 = vmatpush2.msra.mxu0 %v1042
      %1376 = vmatprep.subr.mxu0 %v1039
      %1377 = vmatpush2.msra.mxu0 %v1038
      %1378 = vmatprep.subr.mxu0 %v1035
      %1379 = vmatpush2.msra.mxu0 %v1034
      %1380 = vmatprep.subr.mxu0 %v1031
      %1381 = vmatpush2.msra.mxu0 %v1030
      %1382 = vmatprep.subr.mxu0 %v1027
      %1383 = vmatpush2.msra.mxu0 %v1026
      %1384 = vmatprep.subr.mxu0 %v1023
      %1385 = vmatpush2.msra.mxu0 %v1022
      %1386 = vmatprep.subr.mxu0 %v1019
      %1387 = vmatpush2.msra.mxu0 %v1018
      %1388 = vmatprep.subr.mxu0 %v1015
      %1389 = vmatpush2.msra.mxu0 %v1014
      %1390 = vmatprep.subr.mxu0 %v1011
      %1391 = vmatpush2.msra.mxu0 %v1010
      %1392 = vmatprep.subr.mxu0 %v1007
      %1393 = vmatpush2.msra.mxu0 %v1006
      %1394 = vmatprep.subr.mxu0 %v1003
      %1395 = vmatpush2.msra.mxu0 %v1002
      %1396 = vmatprep.subr.mxu0 %v999
      %1397 = vmatpush2.msra.mxu0 %v998
      %1398 = vmatprep.subr.mxu0 %v995
      %1399 = vmatpush2.msra.mxu0 %v994
      %1400 = vmatprep.mubr.f32.mxu0 %v919
      %1401 = vmatmul.mubr.f32.gmra.mxu0 %v918
      %v1402 = vpop.f32.mrf.mxu0
      %v1403 = vadd.f32 %v1319, %v1402
      %v1404 = vpop.f32.mrf.mxu0
      %v1405 = vadd.f32 %v1323, %v1404
      %1406 = vdwg.mxu0
      %1407 = vmatprep.subr.mxu0 %v1119
      %1408 = vmatpush1.msra.mxu0 %v1118
      %1409 = vmatprep.subr.mxu0 %v1115
      %1410 = vmatpush1.msra.mxu0 %v1114
      %1411 = vmatprep.subr.mxu0 %v1111
      %1412 = vmatpush1.msra.mxu0 %v1110
      %1413 = vmatprep.subr.mxu0 %v1107
      %1414 = vmatpush1.msra.mxu0 %v1106
      %1415 = vmatprep.subr.mxu0 %v1103
      %1416 = vmatpush1.msra.mxu0 %v1102
      %1417 = vmatprep.subr.mxu0 %v1099
      %1418 = vmatpush1.msra.mxu0 %v1098
      %1419 = vmatprep.subr.mxu0 %v1095
      %1420 = vmatpush1.msra.mxu0 %v1094
      %1421 = vmatprep.subr.mxu0 %v1091
      %1422 = vmatpush1.msra.mxu0 %v1090
      %1423 = vmatprep.subr.mxu0 %v1087
      %1424 = vmatpush1.msra.mxu0 %v1086
      %1425 = vmatprep.subr.mxu0 %v1083
      %1426 = vmatpush1.msra.mxu0 %v1082
      %1427 = vmatprep.subr.mxu0 %v1079
      %1428 = vmatpush1.msra.mxu0 %v1078
      %1429 = vmatprep.subr.mxu0 %v1075
      %1430 = vmatpush1.msra.mxu0 %v1074
      %1431 = vmatprep.subr.mxu0 %v1071
      %1432 = vmatpush1.msra.mxu0 %v1070
      %1433 = vmatprep.subr.mxu0 %v1067
      %1434 = vmatpush1.msra.mxu0 %v1066
      %1435 = vmatprep.subr.mxu0 %v1063
      %1436 = vmatpush1.msra.mxu0 %v1062
      %1437 = vmatprep.subr.mxu0 %v1059
      %1438 = vmatpush1.msra.mxu0 %v1058
      %1439 = vmatprep.subr.mxu0 %v1183
      %1440 = vmatpush2.msra.mxu0 %v1182
      %1441 = vmatprep.subr.mxu0 %v1179
      %1442 = vmatpush2.msra.mxu0 %v1178
      %1443 = vmatprep.subr.mxu0 %v1175
      %1444 = vmatpush2.msra.mxu0 %v1174
      %1445 = vmatprep.subr.mxu0 %v1171
      %1446 = vmatpush2.msra.mxu0 %v1170
      %1447 = vmatprep.subr.mxu0 %v1167
      %1448 = vmatpush2.msra.mxu0 %v1166
      %1449 = vmatprep.subr.mxu0 %v1163
      %1450 = vmatpush2.msra.mxu0 %v1162
      %1451 = vmatprep.subr.mxu0 %v1159
      %1452 = vmatpush2.msra.mxu0 %v1158
      %1453 = vmatprep.subr.mxu0 %v1155
      %1454 = vmatpush2.msra.mxu0 %v1154
      %1455 = vmatprep.subr.mxu0 %v1151
      %1456 = vmatpush2.msra.mxu0 %v1150
      %1457 = vmatprep.subr.mxu0 %v1147
      %1458 = vmatpush2.msra.mxu0 %v1146
      %1459 = vmatprep.subr.mxu0 %v1143
      %1460 = vmatpush2.msra.mxu0 %v1142
      %1461 = vmatprep.subr.mxu0 %v1139
      %1462 = vmatpush2.msra.mxu0 %v1138
      %1463 = vmatprep.subr.mxu0 %v1135
      %1464 = vmatpush2.msra.mxu0 %v1134
      %1465 = vmatprep.subr.mxu0 %v1131
      %1466 = vmatpush2.msra.mxu0 %v1130
      %1467 = vmatprep.subr.mxu0 %v1127
      %1468 = vmatpush2.msra.mxu0 %v1126
      %1469 = vmatprep.subr.mxu0 %v1123
      %1470 = vmatpush2.msra.mxu0 %v1122
      %1471 = vmatprep.mubr.f32.mxu0 %v923
      %1472 = vmatmul.mubr.f32.gmra.mxu0 %v922
      %v1473 = vpop.f32.mrf.mxu0
      %v1474 = vadd.f32 %v1403, %v1473
      %v1475 = vpop.f32.mrf.mxu0
      %v1476 = vadd.f32 %v1405, %v1475
      %1477 = vdwg.mxu0
      %1478 = vmatprep.subr.mxu0 %v1247
      %1479 = vmatpush1.msra.mxu0 %v1246
      %1480 = vmatprep.subr.mxu0 %v1243
      %1481 = vmatpush1.msra.mxu0 %v1242
      %1482 = vmatprep.subr.mxu0 %v1239
      %1483 = vmatpush1.msra.mxu0 %v1238
      %1484 = vmatprep.subr.mxu0 %v1235
      %1485 = vmatpush1.msra.mxu0 %v1234
      %1486 = vmatprep.subr.mxu0 %v1231
      %1487 = vmatpush1.msra.mxu0 %v1230
      %1488 = vmatprep.subr.mxu0 %v1227
      %1489 = vmatpush1.msra.mxu0 %v1226
      %1490 = vmatprep.subr.mxu0 %v1223
      %1491 = vmatpush1.msra.mxu0 %v1222
      %1492 = vmatprep.subr.mxu0 %v1219
      %1493 = vmatpush1.msra.mxu0 %v1218
      %1494 = vmatprep.subr.mxu0 %v1215
      %1495 = vmatpush1.msra.mxu0 %v1214
      %1496 = vmatprep.subr.mxu0 %v1211
      %1497 = vmatpush1.msra.mxu0 %v1210
      %1498 = vmatprep.subr.mxu0 %v1207
      %1499 = vmatpush1.msra.mxu0 %v1206
      %1500 = vmatprep.subr.mxu0 %v1203
      %1501 = vmatpush1.msra.mxu0 %v1202
      %1502 = vmatprep.subr.mxu0 %v1199
      %1503 = vmatpush1.msra.mxu0 %v1198
      %1504 = vmatprep.subr.mxu0 %v1195
      %1505 = vmatpush1.msra.mxu0 %v1194
      %1506 = vmatprep.subr.mxu0 %v1191
      %1507 = vmatpush1.msra.mxu0 %v1190
      %1508 = vmatprep.subr.mxu0 %v1187
      %1509 = vmatpush1.msra.mxu0 %v1186
      %1510 = vmatprep.subr.mxu0 %v1311
      %1511 = vmatpush2.msra.mxu0 %v1310
      %1512 = vmatprep.subr.mxu0 %v1307
      %1513 = vmatpush2.msra.mxu0 %v1306
      %1514 = vmatprep.subr.mxu0 %v1303
      %1515 = vmatpush2.msra.mxu0 %v1302
      %1516 = vmatprep.subr.mxu0 %v1299
      %1517 = vmatpush2.msra.mxu0 %v1298
      %1518 = vmatprep.subr.mxu0 %v1295
      %1519 = vmatpush2.msra.mxu0 %v1294
      %1520 = vmatprep.subr.mxu0 %v1291
      %1521 = vmatpush2.msra.mxu0 %v1290
      %1522 = vmatprep.subr.mxu0 %v1287
      %1523 = vmatpush2.msra.mxu0 %v1286
      %1524 = vmatprep.subr.mxu0 %v1283
      %1525 = vmatpush2.msra.mxu0 %v1282
      %1526 = vmatprep.subr.mxu0 %v1279
      %1527 = vmatpush2.msra.mxu0 %v1278
      %1528 = vmatprep.subr.mxu0 %v1275
      %1529 = vmatpush2.msra.mxu0 %v1274
      %1530 = vmatprep.subr.mxu0 %v1271
      %1531 = vmatpush2.msra.mxu0 %v1270
      %1532 = vmatprep.subr.mxu0 %v1267
      %1533 = vmatpush2.msra.mxu0 %v1266
      %1534 = vmatprep.subr.mxu0 %v1263
      %1535 = vmatpush2.msra.mxu0 %v1262
      %1536 = vmatprep.subr.mxu0 %v1259
      %1537 = vmatpush2.msra.mxu0 %v1258
      %1538 = vmatprep.subr.mxu0 %v1255
      %1539 = vmatpush2.msra.mxu0 %v1254
      %1540 = vmatprep.subr.mxu0 %v1251
      %1541 = vmatpush2.msra.mxu0 %v1250
      %1542 = vmatprep.mubr.f32.mxu0 %v927
      %1543 = vmatmul.mubr.f32.gmra.mxu0 %v926
      %v1544 = vpop.f32.mrf.mxu0
      %v1545 = vadd.f32 %v1474, %v1544
      %v1546 = vpop.f32.mrf.mxu0
      %v1547 = vadd.f32 %v1476, %v1546
      %1548 = vdwg.mxu0
      %1549 = vmatprep.subr.mxu0 %v993
      %1550 = vmatpush1.msra.mxu0 %v992
      %1551 = vmatprep.subr.mxu0 %v989
      %1552 = vmatpush1.msra.mxu0 %v988
      %1553 = vmatprep.subr.mxu0 %v985
      %1554 = vmatpush1.msra.mxu0 %v984
      %1555 = vmatprep.subr.mxu0 %v981
      %1556 = vmatpush1.msra.mxu0 %v980
      %1557 = vmatprep.subr.mxu0 %v977
      %1558 = vmatpush1.msra.mxu0 %v976
      %1559 = vmatprep.subr.mxu0 %v973
      %1560 = vmatpush1.msra.mxu0 %v972
      %1561 = vmatprep.subr.mxu0 %v969
      %1562 = vmatpush1.msra.mxu0 %v968
      %1563 = vmatprep.subr.mxu0 %v965
      %1564 = vmatpush1.msra.mxu0 %v964
      %1565 = vmatprep.subr.mxu0 %v961
      %1566 = vmatpush1.msra.mxu0 %v960
      %1567 = vmatprep.subr.mxu0 %v957
      %1568 = vmatpush1.msra.mxu0 %v956
      %1569 = vmatprep.subr.mxu0 %v953
      %1570 = vmatpush1.msra.mxu0 %v952
      %1571 = vmatprep.subr.mxu0 %v949
      %1572 = vmatpush1.msra.mxu0 %v948
      %1573 = vmatprep.subr.mxu0 %v945
      %1574 = vmatpush1.msra.mxu0 %v944
      %1575 = vmatprep.subr.mxu0 %v941
      %1576 = vmatpush1.msra.mxu0 %v940
      %1577 = vmatprep.subr.mxu0 %v937
      %1578 = vmatpush1.msra.mxu0 %v936
      %1579 = vmatprep.subr.mxu0 %v933
      %1580 = vmatpush1.msra.mxu0 %v932
      %1581 = vmatprep.subr.mxu0 %v1057
      %1582 = vmatpush2.msra.mxu0 %v1056
      %1583 = vmatprep.subr.mxu0 %v1053
      %1584 = vmatpush2.msra.mxu0 %v1052
      %1585 = vmatprep.subr.mxu0 %v1049
      %1586 = vmatpush2.msra.mxu0 %v1048
      %1587 = vmatprep.subr.mxu0 %v1045
      %1588 = vmatpush2.msra.mxu0 %v1044
      %1589 = vmatprep.subr.mxu0 %v1041
      %1590 = vmatpush2.msra.mxu0 %v1040
      %1591 = vmatprep.subr.mxu0 %v1037
      %1592 = vmatpush2.msra.mxu0 %v1036
      %1593 = vmatprep.subr.mxu0 %v1033
      %1594 = vmatpush2.msra.mxu0 %v1032
      %1595 = vmatprep.subr.mxu0 %v1029
      %1596 = vmatpush2.msra.mxu0 %v1028
      %1597 = vmatprep.subr.mxu0 %v1025
      %1598 = vmatpush2.msra.mxu0 %v1024
      %1599 = vmatprep.subr.mxu0 %v1021
      %1600 = vmatpush2.msra.mxu0 %v1020
      %1601 = vmatprep.subr.mxu0 %v1017
      %1602 = vmatpush2.msra.mxu0 %v1016
      %1603 = vmatprep.subr.mxu0 %v1013
      %1604 = vmatpush2.msra.mxu0 %v1012
      %1605 = vmatprep.subr.mxu0 %v1009
      %1606 = vmatpush2.msra.mxu0 %v1008
      %1607 = vmatprep.subr.mxu0 %v1005
      %1608 = vmatpush2.msra.mxu0 %v1004
      %1609 = vmatprep.subr.mxu0 %v1001
      %1610 = vmatpush2.msra.mxu0 %v1000
      %1611 = vmatprep.subr.mxu0 %v997
      %1612 = vmatpush2.msra.mxu0 %v996
      %1613 = vmatprep.mubr.f32.mxu0 %v919
      %1614 = vmatmul.mubr.f32.gmra.mxu0 %v918
      %v1615 = vpop.f32.mrf.mxu0
      %v1616 = vadd.f32 %v1327, %v1615
      %v1617 = vpop.f32.mrf.mxu0
      %v1618 = vadd.f32 %v1331, %v1617
      %1619 = vdwg.mxu0
      %1620 = vmatprep.subr.mxu0 %v1121
      %1621 = vmatpush1.msra.mxu0 %v1120
      %1622 = vmatprep.subr.mxu0 %v1117
      %1623 = vmatpush1.msra.mxu0 %v1116
      %1624 = vmatprep.subr.mxu0 %v1113
      %1625 = vmatpush1.msra.mxu0 %v1112
      %1626 = vmatprep.subr.mxu0 %v1109
      %1627 = vmatpush1.msra.mxu0 %v1108
      %1628 = vmatprep.subr.mxu0 %v1105
      %1629 = vmatpush1.msra.mxu0 %v1104
      %1630 = vmatprep.subr.mxu0 %v1101
      %1631 = vmatpush1.msra.mxu0 %v1100
      %1632 = vmatprep.subr.mxu0 %v1097
      %1633 = vmatpush1.msra.mxu0 %v1096
      %1634 = vmatprep.subr.mxu0 %v1093
      %1635 = vmatpush1.msra.mxu0 %v1092
      %1636 = vmatprep.subr.mxu0 %v1089
      %1637 = vmatpush1.msra.mxu0 %v1088
      %1638 = vmatprep.subr.mxu0 %v1085
      %1639 = vmatpush1.msra.mxu0 %v1084
      %1640 = vmatprep.subr.mxu0 %v1081
      %1641 = vmatpush1.msra.mxu0 %v1080
      %1642 = vmatprep.subr.mxu0 %v1077
      %1643 = vmatpush1.msra.mxu0 %v1076
      %1644 = vmatprep.subr.mxu0 %v1073
      %1645 = vmatpush1.msra.mxu0 %v1072
      %1646 = vmatprep.subr.mxu0 %v1069
      %1647 = vmatpush1.msra.mxu0 %v1068
      %1648 = vmatprep.subr.mxu0 %v1065
      %1649 = vmatpush1.msra.mxu0 %v1064
      %1650 = vmatprep.subr.mxu0 %v1061
      %1651 = vmatpush1.msra.mxu0 %v1060
      %1652 = vmatprep.subr.mxu0 %v1185
      %1653 = vmatpush2.msra.mxu0 %v1184
      %1654 = vmatprep.subr.mxu0 %v1181
      %1655 = vmatpush2.msra.mxu0 %v1180
      %1656 = vmatprep.subr.mxu0 %v1177
      %1657 = vmatpush2.msra.mxu0 %v1176
      %1658 = vmatprep.subr.mxu0 %v1173
      %1659 = vmatpush2.msra.mxu0 %v1172
      %1660 = vmatprep.subr.mxu0 %v1169
      %1661 = vmatpush2.msra.mxu0 %v1168
      %1662 = vmatprep.subr.mxu0 %v1165
      %1663 = vmatpush2.msra.mxu0 %v1164
      %1664 = vmatprep.subr.mxu0 %v1161
      %1665 = vmatpush2.msra.mxu0 %v1160
      %1666 = vmatprep.subr.mxu0 %v1157
      %1667 = vmatpush2.msra.mxu0 %v1156
      %1668 = vmatprep.subr.mxu0 %v1153
      %1669 = vmatpush2.msra.mxu0 %v1152
      %1670 = vmatprep.subr.mxu0 %v1149
      %1671 = vmatpush2.msra.mxu0 %v1148
      %1672 = vmatprep.subr.mxu0 %v1145
      %1673 = vmatpush2.msra.mxu0 %v1144
      %1674 = vmatprep.subr.mxu0 %v1141
      %1675 = vmatpush2.msra.mxu0 %v1140
      %1676 = vmatprep.subr.mxu0 %v1137
      %1677 = vmatpush2.msra.mxu0 %v1136
      %1678 = vmatprep.subr.mxu0 %v1133
      %1679 = vmatpush2.msra.mxu0 %v1132
      %1680 = vmatprep.subr.mxu0 %v1129
      %1681 = vmatpush2.msra.mxu0 %v1128
      %1682 = vmatprep.subr.mxu0 %v1125
      %1683 = vmatpush2.msra.mxu0 %v1124
      %1684 = vmatprep.mubr.f32.mxu0 %v923
      %1685 = vmatmul.mubr.f32.gmra.mxu0 %v922
      %v1686 = vpop.f32.mrf.mxu0
      %v1687 = vadd.f32 %v1616, %v1686
      %v1688 = vpop.f32.mrf.mxu0
      %v1689 = vadd.f32 %v1618, %v1688
      %1690 = vdwg.mxu0
      %1691 = vmatprep.subr.mxu0 %v1249
      %1692 = vmatpush1.msra.mxu0 %v1248
      %1693 = vmatprep.subr.mxu0 %v1245
      %1694 = vmatpush1.msra.mxu0 %v1244
      %1695 = vmatprep.subr.mxu0 %v1241
      %1696 = vmatpush1.msra.mxu0 %v1240
      %1697 = vmatprep.subr.mxu0 %v1237
      %1698 = vmatpush1.msra.mxu0 %v1236
      %1699 = vmatprep.subr.mxu0 %v1233
      %1700 = vmatpush1.msra.mxu0 %v1232
      %1701 = vmatprep.subr.mxu0 %v1229
      %1702 = vmatpush1.msra.mxu0 %v1228
      %1703 = vmatprep.subr.mxu0 %v1225
      %1704 = vmatpush1.msra.mxu0 %v1224
      %1705 = vmatprep.subr.mxu0 %v1221
      %1706 = vmatpush1.msra.mxu0 %v1220
      %1707 = vmatprep.subr.mxu0 %v1217
      %1708 = vmatpush1.msra.mxu0 %v1216
      %1709 = vmatprep.subr.mxu0 %v1213
      %1710 = vmatpush1.msra.mxu0 %v1212
      %1711 = vmatprep.subr.mxu0 %v1209
      %1712 = vmatpush1.msra.mxu0 %v1208
      %1713 = vmatprep.subr.mxu0 %v1205
      %1714 = vmatpush1.msra.mxu0 %v1204
      %1715 = vmatprep.subr.mxu0 %v1201
      %1716 = vmatpush1.msra.mxu0 %v1200
      %1717 = vmatprep.subr.mxu0 %v1197
      %1718 = vmatpush1.msra.mxu0 %v1196
      %1719 = vmatprep.subr.mxu0 %v1193
      %1720 = vmatpush1.msra.mxu0 %v1192
      %1721 = vmatprep.subr.mxu0 %v1189
      %1722 = vmatpush1.msra.mxu0 %v1188
      %1723 = vmatprep.subr.mxu0 %v1313
      %1724 = vmatpush2.msra.mxu0 %v1312
      %1725 = vmatprep.subr.mxu0 %v1309
      %1726 = vmatpush2.msra.mxu0 %v1308
      %1727 = vmatprep.subr.mxu0 %v1305
      %1728 = vmatpush2.msra.mxu0 %v1304
      %1729 = vmatprep.subr.mxu0 %v1301
      %1730 = vmatpush2.msra.mxu0 %v1300
      %1731 = vmatprep.subr.mxu0 %v1297
      %1732 = vmatpush2.msra.mxu0 %v1296
      %1733 = vmatprep.subr.mxu0 %v1293
      %1734 = vmatpush2.msra.mxu0 %v1292
      %1735 = vmatprep.subr.mxu0 %v1289
      %1736 = vmatpush2.msra.mxu0 %v1288
      %1737 = vmatprep.subr.mxu0 %v1285
      %1738 = vmatpush2.msra.mxu0 %v1284
      %1739 = vmatprep.subr.mxu0 %v1281
      %1740 = vmatpush2.msra.mxu0 %v1280
      %1741 = vmatprep.subr.mxu0 %v1277
      %1742 = vmatpush2.msra.mxu0 %v1276
      %1743 = vmatprep.subr.mxu0 %v1273
      %1744 = vmatpush2.msra.mxu0 %v1272
      %1745 = vmatprep.subr.mxu0 %v1269
      %1746 = vmatpush2.msra.mxu0 %v1268
      %1747 = vmatprep.subr.mxu0 %v1265
      %1748 = vmatpush2.msra.mxu0 %v1264
      %1749 = vmatprep.subr.mxu0 %v1261
      %1750 = vmatpush2.msra.mxu0 %v1260
      %1751 = vmatprep.subr.mxu0 %v1257
      %1752 = vmatpush2.msra.mxu0 %v1256
      %1753 = vmatprep.subr.mxu0 %v1253
      %1754 = vmatpush2.msra.mxu0 %v1252
      %1755 = vmatprep.mubr.f32.mxu0 %v927
      %1756 = vmatmul.mubr.f32.gmra.mxu0 %v926
      %v1757 = vpop.f32.mrf.mxu0
      %v1758 = vadd.f32 %v1687, %v1757
      %v1759 = vpop.f32.mrf.mxu0
      %v1760 = vadd.f32 %v1689, %v1759
      %1761 = vdwg.mxu0
      %v1762 = vmax.f32 %v1545, %v1547
      %v1763 = vmax.f32 %v1758, %v1760
      %v1764 = vmax.f32 %v1762, %v1763
      %v1765 = vmax.f32 %v1764, 0.0
      %v1767 = vrot.slane %v1765, 1
      %v1769 = vrot.slane %v1765, 2
      %v1771 = vrot.slane %v1765, 3
      %v1773 = vld [vmem:[%s5] sm:$0xff]
      %v1774 = vld [vmem:[%s5 + $0x8] sm:$0xff]
      %v1775 = vld [vmem:[%s5 + $0x10] sm:$0xff]
      %v1776 = vld [vmem:[%s5 + $0x18] sm:$0xff]
      %v1777 = vld [vmem:[%s5 + $0x20] sm:$0xff]
      %v1778 = vld [vmem:[%s5 + $0x28] sm:$0xff]
      %v1779 = vld [vmem:[%s5 + $0x30] sm:$0xff]
      %v1780 = vld [vmem:[%s5 + $0x38] sm:$0xff]
      %v1781 = vld [vmem:[%s5 + $0x40] sm:$0xff]
      %v1782 = vld [vmem:[%s5 + $0x48] sm:$0xff]
      %v1783 = vld [vmem:[%s5 + $0x50] sm:$0xff]
      %v1784 = vld [vmem:[%s5 + $0x58] sm:$0xff]
      %v1785 = vld [vmem:[%s5 + $0x60] sm:$0xff]
      %v1786 = vld [vmem:[%s5 + $0x68] sm:$0xff]
      %v1787 = vld [vmem:[%s5 + $0x70] sm:$0xff]
      %v1788 = vld [vmem:[%s5 + $0x78] sm:$0xff]
      %v1789 = vld [vmem:[%s5 + $0x80] sm:$0xff]
      %v1790 = vld [vmem:[%s5 + $0x88] sm:$0xff]
      %v1791 = vld [vmem:[%s5 + $0x90] sm:$0xff]
      %v1792 = vld [vmem:[%s5 + $0x98] sm:$0xff]
      %v1793 = vld [vmem:[%s5 + $0xa0] sm:$0xff]
      %v1794 = vld [vmem:[%s5 + $0xa8] sm:$0xff]
      %v1795 = vld [vmem:[%s5 + $0xb0] sm:$0xff]
      %v1796 = vld [vmem:[%s5 + $0xb8] sm:$0xff]
      %v1797 = vld [vmem:[%s5 + $0xc0] sm:$0xff]
      %v1798 = vld [vmem:[%s5 + $0xc8] sm:$0xff]
      %v1799 = vld [vmem:[%s5 + $0xd0] sm:$0xff]
      %v1800 = vld [vmem:[%s5 + $0xd8] sm:$0xff]
      %v1801 = vld [vmem:[%s5 + $0xe0] sm:$0xff]
      %v1802 = vld [vmem:[%s5 + $0xe8] sm:$0xff]
      %v1803 = vld [vmem:[%s5 + $0xf0] sm:$0xff]
      %v1804 = vld [vmem:[%s5 + $0xf8] sm:$0xff]
      %v1805 = vld [vmem:[%s5 + $0x100] sm:$0xff]
      %v1806 = vld [vmem:[%s5 + $0x108] sm:$0xff]
      %v1807 = vld [vmem:[%s5 + $0x110] sm:$0xff]
      %v1808 = vld [vmem:[%s5 + $0x118] sm:$0xff]
      %v1809 = vld [vmem:[%s5 + $0x120] sm:$0xff]
      %v1810 = vld [vmem:[%s5 + $0x128] sm:$0xff]
      %v1811 = vld [vmem:[%s5 + $0x130] sm:$0xff]
      %v1812 = vld [vmem:[%s5 + $0x138] sm:$0xff]
      %v1813 = vld [vmem:[%s5 + $0x140] sm:$0xff]
      %v1814 = vld [vmem:[%s5 + $0x148] sm:$0xff]
      %v1815 = vld [vmem:[%s5 + $0x150] sm:$0xff]
      %v1816 = vld [vmem:[%s5 + $0x158] sm:$0xff]
      %v1817 = vld [vmem:[%s5 + $0x160] sm:$0xff]
      %v1818 = vld [vmem:[%s5 + $0x168] sm:$0xff]
      %v1819 = vld [vmem:[%s5 + $0x170] sm:$0xff]
      %v1820 = vld [vmem:[%s5 + $0x178] sm:$0xff]
      %v1821 = vld [vmem:[%s5 + $0x180] sm:$0xff]
      %v1822 = vld [vmem:[%s5 + $0x188] sm:$0xff]
      %v1823 = vld [vmem:[%s5 + $0x190] sm:$0xff]
      %v1824 = vld [vmem:[%s5 + $0x198] sm:$0xff]
      %v1825 = vld [vmem:[%s5 + $0x1a0] sm:$0xff]
      %v1826 = vld [vmem:[%s5 + $0x1a8] sm:$0xff]
      %v1827 = vld [vmem:[%s5 + $0x1b0] sm:$0xff]
      %v1828 = vld [vmem:[%s5 + $0x1b8] sm:$0xff]
      %v1829 = vld [vmem:[%s5 + $0x1c0] sm:$0xff]
      %v1830 = vld [vmem:[%s5 + $0x1c8] sm:$0xff]
      %v1831 = vld [vmem:[%s5 + $0x1d0] sm:$0xff]
      %v1832 = vld [vmem:[%s5 + $0x1d8] sm:$0xff]
      %v1833 = vld [vmem:[%s5 + $0x1e0] sm:$0xff]
      %v1834 = vld [vmem:[%s5 + $0x1e8] sm:$0xff]
      %v1835 = vld [vmem:[%s5 + $0x1f0] sm:$0xff]
      %v1836 = vld [vmem:[%s5 + $0x1f8] sm:$0xff]
      %v1837 = vld [vmem:[%s6] sm:$0x1]
      %1838 = vmatprep.subr.mxu0 0.0
      %1839 = vmatpush1.msra.mxu0 %v1788
      %1840 = vmatprep.subr.mxu0 0.0
      %1841 = vmatpush1.msra.mxu0 %v1787
      %1842 = vmatprep.subr.mxu0 0.0
      %1843 = vmatpush1.msra.mxu0 %v1786
      %1844 = vmatprep.subr.mxu0 0.0
      %1845 = vmatpush1.msra.mxu0 %v1785
      %1846 = vmatprep.subr.mxu0 0.0
      %1847 = vmatpush1.msra.mxu0 %v1784
      %1848 = vmatprep.subr.mxu0 0.0
      %1849 = vmatpush1.msra.mxu0 %v1783
      %1850 = vmatprep.subr.mxu0 0.0
      %1851 = vmatpush1.msra.mxu0 %v1782
      %1852 = vmatprep.subr.mxu0 0.0
      %1853 = vmatpush1.msra.mxu0 %v1781
      %1854 = vmatprep.subr.mxu0 0.0
      %1855 = vmatpush1.msra.mxu0 %v1780
      %1856 = vmatprep.subr.mxu0 0.0
      %1857 = vmatpush1.msra.mxu0 %v1779
      %1858 = vmatprep.subr.mxu0 0.0
      %1859 = vmatpush1.msra.mxu0 %v1778
      %1860 = vmatprep.subr.mxu0 0.0
      %1861 = vmatpush1.msra.mxu0 %v1777
      %1862 = vmatprep.subr.mxu0 0.0
      %1863 = vmatpush1.msra.mxu0 %v1776
      %1864 = vmatprep.subr.mxu0 0.0
      %1865 = vmatpush1.msra.mxu0 %v1775
      %1866 = vmatprep.subr.mxu0 0.0
      %1867 = vmatpush1.msra.mxu0 %v1774
      %1868 = vmatprep.subr.mxu0 0.0
      %1869 = vmatpush1.msra.mxu0 %v1773
      %1870 = vmatprep.subr.mxu0 0.0
      %1871 = vmatpush2.msra.mxu0 %v1804
      %1872 = vmatprep.subr.mxu0 0.0
      %1873 = vmatpush2.msra.mxu0 %v1803
      %1874 = vmatprep.subr.mxu0 0.0
      %1875 = vmatpush2.msra.mxu0 %v1802
      %1876 = vmatprep.subr.mxu0 0.0
      %1877 = vmatpush2.msra.mxu0 %v1801
      %1878 = vmatprep.subr.mxu0 0.0
      %1879 = vmatpush2.msra.mxu0 %v1800
      %1880 = vmatprep.subr.mxu0 0.0
      %1881 = vmatpush2.msra.mxu0 %v1799
      %1882 = vmatprep.subr.mxu0 0.0
      %1883 = vmatpush2.msra.mxu0 %v1798
      %1884 = vmatprep.subr.mxu0 0.0
      %1885 = vmatpush2.msra.mxu0 %v1797
      %1886 = vmatprep.subr.mxu0 0.0
      %1887 = vmatpush2.msra.mxu0 %v1796
      %1888 = vmatprep.subr.mxu0 0.0
      %1889 = vmatpush2.msra.mxu0 %v1795
      %1890 = vmatprep.subr.mxu0 0.0
      %1891 = vmatpush2.msra.mxu0 %v1794
      %1892 = vmatprep.subr.mxu0 0.0
      %1893 = vmatpush2.msra.mxu0 %v1793
      %1894 = vmatprep.subr.mxu0 0.0
      %1895 = vmatpush2.msra.mxu0 %v1792
      %1896 = vmatprep.subr.mxu0 0.0
      %1897 = vmatpush2.msra.mxu0 %v1791
      %1898 = vmatprep.subr.mxu0 0.0
      %1899 = vmatpush2.msra.mxu0 %v1790
      %1900 = vmatprep.subr.mxu0 0.0
      %1901 = vmatpush2.msra.mxu0 %v1789
      %1902 = vmatprep.mubr.f32.mxu0 %v1767
      %1903 = vmatmul.mubr.f32.gmra.mxu0 %v1765
      %v1904 = vpop.f32.mrf.mxu0
      %v1905 = vadd.f32 %v1837, %v1904
      %v1906 = vpop.f32.mrf.mxu0
      %1907 = vdwg.mxu0
      %1908 = vmatprep.subr.mxu0 0.0
      %1909 = vmatpush1.msra.mxu0 %v1820
      %1910 = vmatprep.subr.mxu0 0.0
      %1911 = vmatpush1.msra.mxu0 %v1819
      %1912 = vmatprep.subr.mxu0 0.0
      %1913 = vmatpush1.msra.mxu0 %v1818
      %1914 = vmatprep.subr.mxu0 0.0
      %1915 = vmatpush1.msra.mxu0 %v1817
      %1916 = vmatprep.subr.mxu0 0.0
      %1917 = vmatpush1.msra.mxu0 %v1816
      %1918 = vmatprep.subr.mxu0 0.0
      %1919 = vmatpush1.msra.mxu0 %v1815
      %1920 = vmatprep.subr.mxu0 0.0
      %1921 = vmatpush1.msra.mxu0 %v1814
      %1922 = vmatprep.subr.mxu0 0.0
      %1923 = vmatpush1.msra.mxu0 %v1813
      %1924 = vmatprep.subr.mxu0 0.0
      %1925 = vmatpush1.msra.mxu0 %v1812
      %1926 = vmatprep.subr.mxu0 0.0
      %1927 = vmatpush1.msra.mxu0 %v1811
      %1928 = vmatprep.subr.mxu0 0.0
      %1929 = vmatpush1.msra.mxu0 %v1810
      %1930 = vmatprep.subr.mxu0 0.0
      %1931 = vmatpush1.msra.mxu0 %v1809
      %1932 = vmatprep.subr.mxu0 0.0
      %1933 = vmatpush1.msra.mxu0 %v1808
      %1934 = vmatprep.subr.mxu0 0.0
      %1935 = vmatpush1.msra.mxu0 %v1807
      %1936 = vmatprep.subr.mxu0 0.0
      %1937 = vmatpush1.msra.mxu0 %v1806
      %1938 = vmatprep.subr.mxu0 0.0
      %1939 = vmatpush1.msra.mxu0 %v1805
      %1940 = vmatprep.subr.mxu0 0.0
      %1941 = vmatpush2.msra.mxu0 %v1836
      %1942 = vmatprep.subr.mxu0 0.0
      %1943 = vmatpush2.msra.mxu0 %v1835
      %1944 = vmatprep.subr.mxu0 0.0
      %1945 = vmatpush2.msra.mxu0 %v1834
      %1946 = vmatprep.subr.mxu0 0.0
      %1947 = vmatpush2.msra.mxu0 %v1833
      %1948 = vmatprep.subr.mxu0 0.0
      %1949 = vmatpush2.msra.mxu0 %v1832
      %1950 = vmatprep.subr.mxu0 0.0
      %1951 = vmatpush2.msra.mxu0 %v1831
      %1952 = vmatprep.subr.mxu0 0.0
      %1953 = vmatpush2.msra.mxu0 %v1830
      %1954 = vmatprep.subr.mxu0 0.0
      %1955 = vmatpush2.msra.mxu0 %v1829
      %1956 = vmatprep.subr.mxu0 0.0
      %1957 = vmatpush2.msra.mxu0 %v1828
      %1958 = vmatprep.subr.mxu0 0.0
      %1959 = vmatpush2.msra.mxu0 %v1827
      %1960 = vmatprep.subr.mxu0 0.0
      %1961 = vmatpush2.msra.mxu0 %v1826
      %1962 = vmatprep.subr.mxu0 0.0
      %1963 = vmatpush2.msra.mxu0 %v1825
      %1964 = vmatprep.subr.mxu0 0.0
      %1965 = vmatpush2.msra.mxu0 %v1824
      %1966 = vmatprep.subr.mxu0 0.0
      %1967 = vmatpush2.msra.mxu0 %v1823
      %1968 = vmatprep.subr.mxu0 0.0
      %1969 = vmatpush2.msra.mxu0 %v1822
      %1970 = vmatprep.subr.mxu0 0.0
      %1971 = vmatpush2.msra.mxu0 %v1821
      %1972 = vmatprep.mubr.f32.mxu0 %v1771
      %1973 = vmatmul.mubr.f32.gmra.mxu0 %v1769
      %v1974 = vpop.f32.mrf.mxu0
      %v1975 = vadd.f32 %v1905, %v1974
      %v1976 = vpop.f32.mrf.mxu0
      %1977 = vdwg.mxu0
      %v1978 = vmax.f32 %v1975, 0.0
      %v1979 = vld [vmem:[%s7] sm:$0xff]
      %v1980 = vld [vmem:[%s7 + $0x8] sm:$0xff]
      %v1981 = vld [vmem:[%s7 + $0x10] sm:$0xff]
      %v1982 = vld [vmem:[%s7 + $0x18] sm:$0xff]
      %v1983 = vld [vmem:[%s7 + $0x20] sm:$0xff]
      %v1984 = vld [vmem:[%s7 + $0x28] sm:$0xff]
      %v1985 = vld [vmem:[%s7 + $0x30] sm:$0x3]
      %v1986 = vld [vmem:[%s8] sm:$0x1]
      %vm1987 = vcmask 408576
      %v1989 = vsel %vm1987, %v1978, 0
      %vm1991 = vcmask 1041408
      %v1993 = vsel %vm1991, %v1985, 0
      %1995 = vmatprep.subr.mxu0 0.0
      %1996 = vmatpush1.msra.mxu0 0.0
      %1997 = vmatprep.subr.mxu0 0.0
      %1998 = vmatpush1.msra.mxu0 0.0
      %1999 = vmatprep.subr.mxu0 0.0
      %2000 = vmatpush1.msra.mxu0 0.0
      %2001 = vmatprep.subr.mxu0 0.0
      %2002 = vmatpush1.msra.mxu0 0.0
      %2003 = vmatprep.subr.mxu0 0.0
      %2004 = vmatpush1.msra.mxu0 0.0
      %2005 = vmatprep.subr.mxu0 0.0
      %2006 = vmatpush1.msra.mxu0 0.0
      %2007 = vmatprep.subr.mxu0 0.0
      %2008 = vmatpush1.msra.mxu0 0.0
      %2009 = vmatprep.subr.mxu0 0.0
      %2010 = vmatpush1.msra.mxu0 0.0
      %2011 = vmatprep.subr.mxu0 0.0
      %2012 = vmatpush1.msra.mxu0 0.0
      %2013 = vmatprep.subr.mxu0 0.0
      %2014 = vmatpush1.msra.mxu0 %v1993
      %2015 = vmatprep.subr.mxu0 0.0
      %2016 = vmatpush1.msra.mxu0 %v1984
      %2017 = vmatprep.subr.mxu0 0.0
      %2018 = vmatpush1.msra.mxu0 %v1983
      %2019 = vmatprep.subr.mxu0 0.0
      %2020 = vmatpush1.msra.mxu0 %v1982
      %2021 = vmatprep.subr.mxu0 0.0
      %2022 = vmatpush1.msra.mxu0 %v1981
      %2023 = vmatprep.subr.mxu0 0.0
      %2024 = vmatpush1.msra.mxu0 %v1980
      %2025 = vmatprep.subr.mxu0 0.0
      %2026 = vmatpush1.msra.mxu0 %v1979
      %2027 = vmatprep.subr.mxu0 0.0
      %2028 = vmatpush2.msra.mxu0 0.0
      %2029 = vmatprep.subr.mxu0 0.0
      %2030 = vmatpush2.msra.mxu0 0.0
      %2031 = vmatprep.subr.mxu0 0.0
      %2032 = vmatpush2.msra.mxu0 0.0
      %2033 = vmatprep.subr.mxu0 0.0
      %2034 = vmatpush2.msra.mxu0 0.0
      %2035 = vmatprep.subr.mxu0 0.0
      %2036 = vmatpush2.msra.mxu0 0.0
      %2037 = vmatprep.subr.mxu0 0.0
      %2038 = vmatpush2.msra.mxu0 0.0
      %2039 = vmatprep.subr.mxu0 0.0
      %2040 = vmatpush2.msra.mxu0 0.0
      %2041 = vmatprep.subr.mxu0 0.0
      %2042 = vmatpush2.msra.mxu0 0.0
      %2043 = vmatprep.subr.mxu0 0.0
      %2044 = vmatpush2.msra.mxu0 0.0
      %2045 = vmatprep.subr.mxu0 0.0
      %2046 = vmatpush2.msra.mxu0 0.0
      %2047 = vmatprep.subr.mxu0 0.0
      %2048 = vmatpush2.msra.mxu0 0.0
      %2049 = vmatprep.subr.mxu0 0.0
      %2050 = vmatpush2.msra.mxu0 0.0
      %2051 = vmatprep.subr.mxu0 0.0
      %2052 = vmatpush2.msra.mxu0 0.0
      %2053 = vmatprep.subr.mxu0 0.0
      %2054 = vmatpush2.msra.mxu0 0.0
      %2055 = vmatprep.subr.mxu0 0.0
      %2056 = vmatpush2.msra.mxu0 0.0
      %2057 = vmatprep.subr.mxu0 0.0
      %2058 = vmatpush2.msra.mxu0 0.0
      %2059 = vmatprep.mubr.f32.mxu0 0.0
      %2060 = vmatmul.mubr.f32.gmra.mxu0 %v1989
      %v2061 = vpop.f32.mrf.mxu0
      %v2062 = vadd.f32 %v1986, %v2061
      %v2063 = vpop.f32.mrf.mxu0
      %2064 = vdwg.mxu0
      %vm2065 = vcmask 253952
      %2066 = vst.msk [vmem:[%s325] sm:$0x1] %vm2065, %v2062
      %p2067 = scmp.lt.s32.totalorder %s20, 1
      %s2068 = scalar_select %p2067, %s20, 1
      %s2069 = scalar_lea.vmem %s9, %s2068
      // Predicated region
      $region57: #{unbounded_grid_loc_net_forward.1} parent=55 // pred_check
        %p2070 = pneg %p232
      $region58: #{unbounded_grid_loc_net_forward.1} parent=55 // pred_check_branch
        %2072 = sbr.rel (%p2070) target = $region60
      $region59: #{unbounded_grid_loc_net_forward.1} parent=55 // pred_region
        _
      $region60: #{unbounded_grid_loc_net_forward.1} parent=55 // pred_fallthru
        _
    $region56: #{unbounded_grid_loc_net_forward.1} parent=5 // pred_fallthru
      _
    %p2073 = scmp.le.s32.totalorder 2, %s15
    // Predicated region
    $region61: #{unbounded_grid_loc_net_forward.1} parent=5 // pred_check
      %p2074 = pneg %p2073
    $region62: #{unbounded_grid_loc_net_forward.1} parent=5 // pred_check_branch
      %2076 = sbr.rel (%p2074) target = $region64
    $region63: #{unbounded_grid_loc_net_forward.1} parent=5 // pred_region
      %s2077 = ssub.s32 %s15, 2
      // Predicated region
      $region65: #{unbounded_grid_loc_net_forward.1} parent=63 // pred_check
        %p2078 = pneg %p238
      $region66: #{unbounded_grid_loc_net_forward.1} parent=63 // pred_check_branch
        %2080 = sbr.rel (%p2078) target = $region68
      $region67: #{unbounded_grid_loc_net_forward.1} parent=63 // pred_region
        %p2081 = scmp.lt.s32.totalorder %s21, 1
        %s2082 = scalar_select %p2081, %s21, 1
        %s2083 = scalar_lea.vmem %s9, %s2082
      $region68: #{unbounded_grid_loc_net_forward.1} parent=63 // pred_fallthru
        _
    $region64: #{unbounded_grid_loc_net_forward.1} parent=5 // pred_fallthru
      _
  $region6: #{unbounded_grid_loc_net_forward.1} parent=0 // loop_footer
    %s19 = sadd.s32 1, %s15
  $region7: #{unbounded_grid_loc_net_forward.1} parent=0 // loop_footer_branch
    %14 = sbr.rel target = $region3
  $region8: #{unbounded_grid_loc_net_forward.1} parent=0 // loop_exit
    _

</llo_original>
